<compile_context>
chip_gen: v6e
topology: v6e:2x2x1
jax: 0.10.0
libtpu: 0.0.40
codegen_flags: <defaults>
</compile_context>

<pallas_src>
import jax
import jax.numpy as jnp
from jax.experimental import pallas as pl
from jax.experimental.pallas import tpu as pltpu


# ----------------------------------------------------------------------------
# Fused kernel: in-kernel embedding gather + encoder stand-in + compression,
# computed only on entity (B-tag) rows; pure-padding tiles are skipped.
# ----------------------------------------------------------------------------
def _fused_entity_kernel(n_ent_ref, tok_ref, emb_ref, w_enc_ref, b_enc_ref,
                         w_cmp_ref, b_cmp_ref, o_ref):
    # n_ent: (1,) i32 SMEM (scalar prefetch)
    # tok:   (TM, 1) i32   packed = token_id*2 + attn_mask_bit
    # emb:   (V, H) bf16   w_enc: (H, H) bf16  b_enc: (1, H) f32
    # w_cmp: (H, D) bf16   b_cmp: (1, D) f32   o: (TM, D) bf16
    tm, d = o_ref.shape
    vocab = emb_ref.shape[0]
    n_ent = n_ent_ref[0]
    row0 = pl.program_id(0) * tm

    @pl.when(row0 < n_ent)                 # tile contains at least one real row
    def _():
        packed = tok_ref[...]                                     # (TM, 1) i32
        attn = (packed & 1).astype(jnp.float32)                   # mask bit
        tok = packed >> 1                                         # token id
        # In-kernel embedding gather: exact one-hot @ table on the MXU.
        one_hot = (jax.lax.broadcasted_iota(jnp.int32, (tm, vocab), 1)
                   == tok).astype(emb_ref.dtype)                  # (TM, V)
        x = jnp.dot(one_hot, emb_ref[...],
                    preferred_element_type=jnp.float32)           # (TM, H)
        h = jnp.dot(x.astype(w_enc_ref.dtype), w_enc_ref[...],
                    preferred_element_type=jnp.float32)
        h = jnp.tanh(h + b_enc_ref[...]) * attn
        y = jnp.dot(h.astype(w_cmp_ref.dtype), w_cmp_ref[...],
                    preferred_element_type=jnp.float32) + b_cmp_ref[...]
        # Rows >= num_entities (gather padding) are zeroed in-kernel.
        row_ids = jax.lax.broadcasted_iota(jnp.int32, (tm, d), 0) + row0
        o_ref[...] = jnp.where(row_ids < n_ent, y, 0.0).astype(o_ref.dtype)

    @pl.when(row0 >= n_ent)                # pure-padding tile: skip all compute
    def _():
        o_ref[...] = jnp.zeros_like(o_ref)


def _encoder_only_kernel(n_ent_ref, tok_ref, emb_ref, w_enc_ref, b_enc_ref,
                         o_ref):
    # Variant used when longformer_output_dim == cand_emb_dim (no compression).
    tm, d = o_ref.shape
    vocab = emb_ref.shape[0]
    n_ent = n_ent_ref[0]
    row0 = pl.program_id(0) * tm

    @pl.when(row0 < n_ent)
    def _():
        packed = tok_ref[...]
        attn = (packed & 1).astype(jnp.float32)
        tok = packed >> 1
        one_hot = (jax.lax.broadcasted_iota(jnp.int32, (tm, vocab), 1)
                   == tok).astype(emb_ref.dtype)
        x = jnp.dot(one_hot, emb_ref[...], preferred_element_type=jnp.float32)
        h = jnp.dot(x.astype(w_enc_ref.dtype), w_enc_ref[...],
                    preferred_element_type=jnp.float32)
        h = jnp.tanh(h + b_enc_ref[...]) * attn
        row_ids = jax.lax.broadcasted_iota(jnp.int32, (tm, d), 0) + row0
        o_ref[...] = jnp.where(row_ids < n_ent, h, 0.0).astype(o_ref.dtype)

    @pl.when(row0 >= n_ent)
    def _():
        o_ref[...] = jnp.zeros_like(o_ref)


def entity_linker_fused(num_entities, packed_tok, word_emb, w_enc, b_enc,
                        w_cmp=None, b_cmp=None, *, tm=256,
                        out_dtype=jnp.bfloat16,
                        vmem_limit_bytes=48 * 1024 * 1024):
    """Fused gather + encoder(+compression) over tm-padded entity rows."""
    n = packed_tok.shape[0]
    v, h = word_emb.shape
    assert n % tm == 0 and tm % 8 == 0, "rows must be a multiple of tm (>=8)"
    assert h % 128 == 0 and v % 128 == 0, "keep lane/contraction dims 128-mult"

    def row_spec(last):
        return pl.BlockSpec((tm, last), lambda i, n_ref: (i, 0))

    def const_spec(shape):
        # Constant index map -> block stays resident across the grid.
        idx = lambda i, n_ref: (0, 0)
        try:    # Single-buffer resident blocks (halves their VMEM footprint).
            return pl.BlockSpec(shape, idx, pipeline_mode=pl.Buffered(1))
        except (AttributeError, TypeError):
            return pl.BlockSpec(shape, idx)   # older jax: default buffering

    if w_cmp is not None:
        d = w_cmp.shape[1]
        assert d % 128 == 0
        kernel = _fused_entity_kernel
        in_specs = [row_spec(1), const_spec((v, h)), const_spec((h, h)),
                    const_spec((1, h)), const_spec((h, d)), const_spec((1, d))]
        args = (num_entities, packed_tok, word_emb, w_enc, b_enc, w_cmp, b_cmp)
    else:
        d = h
        kernel = _encoder_only_kernel
        in_specs = [row_spec(1), const_spec((v, h)), const_spec((h, h)),
                    const_spec((1, h))]
        args = (num_entities, packed_tok, word_emb, w_enc, b_enc)

    return pl.pallas_call(
        kernel,
        out_shape=jax.ShapeDtypeStruct((n, d), out_dtype),
        grid_spec=pltpu.PrefetchScalarGridSpec(
            num_scalar_prefetch=1,            # num_entities -> SMEM
            grid=(n // tm,),
            in_specs=in_specs,
            out_specs=pl.BlockSpec((tm, d), lambda i, n_ref: (i, 0)),
        ),
        compiler_params=pltpu.CompilerParams(
            dimension_semantics=("parallel",),
            vmem_limit_bytes=vmem_limit_bytes),
    )(*args)


# ----------------------------------------------------------------------------
# Module wrapper (mirrors LongEntityLinkerModule.forward)
# ----------------------------------------------------------------------------
class LongEntityLinkerPallas:
    """Pallas port of LongEntityLinkerModule.

    TODO(synk): the pretrained Longformer/BERT context encoder has no
    in-script Pallas equivalent; a deterministic embedding-lookup + single
    dense+tanh layer (gated by the attention mask) stands in for
    get_raw_ctxt_encoding.
    TODO(synk): the in-kernel one-hot gather assumes a small, VMEM-resident
    vocab table; a real ~50k-row table would stay in HBM and be fetched
    per-row with pltpu.make_async_copy instead.
    """

    def __init__(self, params, key, *, tm=256, out_dtype=jnp.bfloat16):
        self.params = params
        self.NULL_IDX = 0
        self.tm = tm
        self.out_dtype = out_dtype
        vocab = params["vocab_size"]
        h = params["longformer_output_dim"]
        d = params["cand_emb_dim"]
        assert h % 128 == 0 and d % 128 == 0 and vocab % 128 == 0, \
            "keep lane dims 128-multiples"

        k0, k1, k2, k3, k4 = jax.random.split(key, 5)
        # Deterministic synthetic parameters (no checkpoint load). Matmul
        # operands are stored bf16 -> MXU-friendly and half the HBM traffic.
        self.word_emb = (jax.random.normal(k0, (vocab, h), jnp.float32)
                         * 0.02).astype(jnp.bfloat16)
        self.w_enc = (jax.random.normal(k1, (h, h), jnp.float32)
                      * (1.0 / h ** 0.5)).astype(jnp.bfloat16)
        self.b_enc = jax.random.normal(k2, (1, h), jnp.float32) * 0.01

        self.linear_compression = None
        if h != d:
            w_cmp = (jax.random.normal(k3, (h, d), jnp.float32)
                     * (1.0 / h ** 0.5)).astype(jnp.bfloat16)
            b_cmp = jax.random.normal(k4, (1, d), jnp.float32) * 0.01
            self.linear_compression = (w_cmp, b_cmp)

    def forward(self, token_idx_ctxt, mask_ctxt, golden_tags, b_tag=1,
                max_entities=None):
        assert golden_tags is not None
        b, s = token_idx_ctxt.shape
        tm = self.tm
        # Static bound on B-tag rows.  B*S is the worst case; on realistic NER
        # data pass max_entities (~5-10% of B*S) to shrink the padded row
        # count (entities beyond the cap would be dropped).
        max_n = b * s if max_entities is None else min(max_entities, b * s)
        n_pad = ((max_n + tm - 1) // tm) * tm

        # Static-size gather of B-tag positions (jnp.nonzero returns indices
        # in increasing order, so `row < num_entities` marks exactly the real
        # rows).  No host sync, no data-dependent shapes / recompiles.
        tag_flat = golden_tags.reshape(-1) == b_tag
        num_entities = jnp.sum(tag_flat).astype(jnp.int32)
        idx = jnp.nonzero(tag_flat, size=n_pad, fill_value=0)[0]

        # ONE narrow int32 stream into the kernel: token id and attention-mask
        # bit packed together (packed = tok*2 + mask).  Embedding rows are
        # looked up inside the kernel, so no (n_pad, H) intermediate hits HBM.
        tok_flat = token_idx_ctxt.reshape(-1).astype(jnp.int32)
        am_flat = (mask_ctxt.reshape(-1) != 0).astype(jnp.int32)
        packed = (jnp.take(tok_flat, idx) * 2
                  + jnp.take(am_flat, idx)).reshape(-1, 1)

        n_ent = jnp.minimum(num_entities, n_pad).reshape(1)   # SMEM prefetch

        if self.linear_compression is not None:
            w_cmp, b_cmp = self.linear_compression
            embeds = entity_linker_fused(
                n_ent, packed, self.word_emb, self.w_enc, self.b_enc,
                w_cmp, b_cmp, tm=tm, out_dtype=self.out_dtype)
        else:
            embeds = entity_linker_fused(
                n_ent, packed, self.word_emb, self.w_enc, self.b_enc,
                tm=tm, out_dtype=self.out_dtype)

        # Static-shape result: rows >= num_entities are zero; callers select
        # real rows with `ctxt_embeds_mask` instead of a dynamic-shape gather.
        valid = jnp.arange(n_pad) < num_entities
        return {"ctxt_embeds": embeds,
                "ctxt_embeds_mask": valid,
                "num_entities": num_entities}


if __name__ == "__main__":
    params = dict(
        use_longformer=True,
        cand_emb_dim=128,            # != longformer_output_dim -> compression
        longformer_output_dim=256,
        vocab_size=512,
    )
    B, S = 2, 256                    # 512 worst-case rows -> 2 grid steps

    root = jax.random.PRNGKey(0)
    k_model, k_tok, k_tag = jax.random.split(root, 3)

    token_idx_ctxt = jax.random.randint(k_tok, (B, S), 1, params["vocab_size"],
                                        dtype=jnp.int32)
    mask_ctxt = jnp.ones((B, S), jnp.int32)
    golden_tags = jax.random.randint(k_tag, (B, S), 0, 3, dtype=jnp.int32)

    model = LongEntityLinkerPallas(params, k_model, tm=256)
    out = model.forward(token_idx_ctxt, mask_ctxt, golden_tags, b_tag=1)
    jax.block_until_ready(out["ctxt_embeds"])

    # --- pure-JAX reference check (test harness only; host sync OK here) ----
    emb_all = jnp.take(model.word_emb, token_idx_ctxt.reshape(-1), axis=0)
    h_ref = jnp.tanh(
        jnp.dot(emb_all, model.w_enc, preferred_element_type=jnp.float32)
        + model.b_enc) * mask_ctxt.reshape(-1, 1).astype(jnp.float32)
    w_cmp, b_cmp = model.linear_compression
    ref_all = jnp.dot(h_ref.astype(jnp.bfloat16), w_cmp,
                      preferred_element_type=jnp.float32) + b_cmp

    tag_flat = golden_tags.reshape(-1) == 1
    n = int(jnp.sum(tag_flat))
    ref_rows = ref_all[jnp.nonzero(tag_flat, size=n)[0]]
    got = out["ctxt_embeds"].astype(jnp.float32)

    n_pad = ((B * S + 255) // 256) * 256
    assert got.shape == (n_pad, params["cand_emb_dim"]), got.shape
    max_err = float(jnp.max(jnp.abs(got[:n] - ref_rows)))
    assert max_err < 5e-2, f"kernel/reference mismatch: {max_err}"
    pad_err = float(jnp.max(jnp.abs(got[n:]))) if n_pad > n else 0.0
    assert pad_err == 0.0, f"padded rows not zeroed: {pad_err}"

    print("KERNEL_OK")
</pallas_src>

<mosaic_0001>
module attributes {stable_mosaic.version = 11 : i64} {
  func.func @_fused_entity_kernel(%arg0: i32, %arg1: memref<1xi32, #tpu.memory_space<smem>>, %arg2: memref<256x1xi32, #tpu.memory_space<vmem>>, %arg3: memref<512x256xbf16, #tpu.memory_space<vmem>>, %arg4: memref<256x256xbf16, #tpu.memory_space<vmem>>, %arg5: memref<1x256xf32, #tpu.memory_space<vmem>>, %arg6: memref<256x128xbf16, #tpu.memory_space<vmem>>, %arg7: memref<1x128xf32, #tpu.memory_space<vmem>>, %arg8: memref<256x128xbf16, #tpu.memory_space<vmem>>) attributes {dimension_semantics = [#tpu.dimension_semantics<parallel>], iteration_bounds = array<i64: 2>, scalar_prefetch = 1 : i64, scratch_operands = 0 : i64, tpu.core_type = #tpu.core_type<tc>, window_params = [{transform_indices = @transform_0, window_bounds = array<i64: 256, 1>}, {pipeline_mode = #tpu.pipeline_mode<synchronous>, transform_indices = @transform_1, window_bounds = array<i64: 512, 256>}, {pipeline_mode = #tpu.pipeline_mode<synchronous>, transform_indices = @transform_2, window_bounds = array<i64: 256, 256>}, {pipeline_mode = #tpu.pipeline_mode<synchronous>, transform_indices = @transform_3, window_bounds = array<i64: 1, 256>}, {pipeline_mode = #tpu.pipeline_mode<synchronous>, transform_indices = @transform_4, window_bounds = array<i64: 256, 128>}, {pipeline_mode = #tpu.pipeline_mode<synchronous>, transform_indices = @transform_5, window_bounds = array<i64: 1, 128>}, {transform_indices = @transform_6, window_bounds = array<i64: 256, 128>}]} {
    %c0 = arith.constant 0 : index
    %0 = memref.load %arg1[%c0] : memref<1xi32, #tpu.memory_space<smem>>
    %c256_i32 = arith.constant 256 : i32
    %1 = arith.muli %arg0, %c256_i32 : i32
    %2 = arith.cmpi slt, %1, %0 : i32
    %3 = arith.extui %2 : i1 to i32
    %c0_i32 = arith.constant 0 : i32
    %4 = arith.cmpi ne, %3, %c0_i32 : i32
    scf.if %4 {
      %c0_1 = arith.constant 0 : index
      %c0_2 = arith.constant 0 : index
      %8 = vector.load %arg2[%c0_1, %c0_2] : memref<256x1xi32, #tpu.memory_space<vmem>>, vector<256x1xi32>
      %c1_i32 = arith.constant 1 : i32
      %9 = vector.broadcast %c1_i32 : i32 to vector<256x1xi32>
      %10 = arith.andi %8, %9 : vector<256x1xi32>
      %11 = arith.sitofp %10 : vector<256x1xi32> to vector<256x1xf32>
      %c1_i32_3 = arith.constant 1 : i32
      %12 = vector.broadcast %c1_i32_3 : i32 to vector<256x1xi32>
      %13 = arith.shrsi %8, %12 : vector<256x1xi32>
      %14 = tpu.iota {dimensions = array<i32: 1>} : vector<256x512xi32>
      %15 = vector.broadcast %13 : vector<256x1xi32> to vector<256x512xi32>
      %16 = arith.cmpi eq, %14, %15 : vector<256x512xi32>
      %17 = arith.extui %16 : vector<256x512xi1> to vector<256x512xi32>
      %18 = arith.sitofp %17 : vector<256x512xi32> to vector<256x512xf32>
      %19 = arith.truncf %18 : vector<256x512xf32> to vector<256x512xbf16>
      %c0_4 = arith.constant 0 : index
      %c0_5 = arith.constant 0 : index
      %20 = vector.load %arg3[%c0_4, %c0_5] : memref<512x256xbf16, #tpu.memory_space<vmem>>, vector<512x256xbf16>
      %cst = arith.constant dense<0.000000e+00> : vector<256x256xf32>
      %21 = tpu.matmul %19, %20, %cst {dimension_numbers = #tpu.dot_dimension_numbers<[1], [0], [0], [1], [0, 0, 1, 1], [], []>} : vector<256x512xbf16>, vector<512x256xbf16>, vector<256x256xf32> -> vector<256x256xf32>
      %22 = arith.truncf %21 : vector<256x256xf32> to vector<256x256xbf16>
      %c0_6 = arith.constant 0 : index
      %c0_7 = arith.constant 0 : index
      %23 = vector.load %arg4[%c0_6, %c0_7] : memref<256x256xbf16, #tpu.memory_space<vmem>>, vector<256x256xbf16>
      %cst_8 = arith.constant dense<0.000000e+00> : vector<256x256xf32>
      %24 = tpu.matmul %22, %23, %cst_8 {dimension_numbers = #tpu.dot_dimension_numbers<[1], [0], [0], [1], [0, 0, 1, 1], [], []>} : vector<256x256xbf16>, vector<256x256xbf16>, vector<256x256xf32> -> vector<256x256xf32>
      %c0_9 = arith.constant 0 : index
      %c0_10 = arith.constant 0 : index
      %25 = vector.load %arg5[%c0_9, %c0_10] : memref<1x256xf32, #tpu.memory_space<vmem>>, vector<1x256xf32>
      %26 = vector.broadcast %25 : vector<1x256xf32> to vector<256x256xf32>
      %27 = arith.addf %24, %26 : vector<256x256xf32>
      %28 = math.tanh %27 : vector<256x256xf32>
      %29 = vector.broadcast %11 : vector<256x1xf32> to vector<256x256xf32>
      %30 = arith.mulf %28, %29 : vector<256x256xf32>
      %31 = arith.truncf %30 : vector<256x256xf32> to vector<256x256xbf16>
      %c0_11 = arith.constant 0 : index
      %c0_12 = arith.constant 0 : index
      %32 = vector.load %arg6[%c0_11, %c0_12] : memref<256x128xbf16, #tpu.memory_space<vmem>>, vector<256x128xbf16>
      %cst_13 = arith.constant dense<0.000000e+00> : vector<256x128xf32>
      %33 = tpu.matmul %31, %32, %cst_13 {dimension_numbers = #tpu.dot_dimension_numbers<[1], [0], [0], [1], [0, 0, 1, 1], [], []>} : vector<256x256xbf16>, vector<256x128xbf16>, vector<256x128xf32> -> vector<256x128xf32>
      %c0_14 = arith.constant 0 : index
      %c0_15 = arith.constant 0 : index
      %34 = vector.load %arg7[%c0_14, %c0_15] : memref<1x128xf32, #tpu.memory_space<vmem>>, vector<1x128xf32>
      %35 = vector.broadcast %34 : vector<1x128xf32> to vector<256x128xf32>
      %36 = arith.addf %33, %35 : vector<256x128xf32>
      %37 = tpu.iota {dimensions = array<i32: 0>} : vector<256x128xi32>
      %38 = vector.broadcast %1 : i32 to vector<256x128xi32>
      %39 = arith.addi %37, %38 : vector<256x128xi32>
      %40 = vector.broadcast %0 : i32 to vector<256x128xi32>
      %41 = arith.cmpi slt, %39, %40 : vector<256x128xi32>
      %cst_16 = arith.constant 0.000000e+00 : f32
      %42 = vector.broadcast %cst_16 : f32 to vector<256x128xf32>
      %43 = arith.select %41, %36, %42 : vector<256x128xi1>, vector<256x128xf32>
      %44 = arith.truncf %43 : vector<256x128xf32> to vector<256x128xbf16>
      %c0_17 = arith.constant 0 : index
      %c0_18 = arith.constant 0 : index
      %45 = vector.load %arg8[%c0_17, %c0_18] : memref<256x128xbf16, #tpu.memory_space<vmem>>, vector<256x128xbf16>
      tpu.vector_store %arg8[%c0_17, %c0_18], %44 {strides = array<i32>} : memref<256x128xbf16, #tpu.memory_space<vmem>>, vector<256x128xbf16>,
    } else {
    }
    %5 = arith.cmpi sge, %1, %0 : i32
    %6 = arith.extui %5 : i1 to i32
    %c0_i32_0 = arith.constant 0 : i32
    %7 = arith.cmpi ne, %6, %c0_i32_0 : i32
    scf.if %7 {
      %cst = arith.constant 0.000000e+00 : bf16
      %8 = vector.broadcast %cst : bf16 to vector<256x128xbf16>
      %c0_1 = arith.constant 0 : index
      %c0_2 = arith.constant 0 : index
      %9 = vector.load %arg8[%c0_1, %c0_2] : memref<256x128xbf16, #tpu.memory_space<vmem>>, vector<256x128xbf16>
      tpu.vector_store %arg8[%c0_1, %c0_2], %8 {strides = array<i32>} : memref<256x128xbf16, #tpu.memory_space<vmem>>, vector<256x128xbf16>,
    } else {
    }
    return
  }
  func.func @transform_0(%arg0: i32, %arg1: memref<1xi32, #tpu.memory_space<smem>>) -> (i32, i32) {
    %c0_i32 = arith.constant 0 : i32
    %c0_i32_0 = arith.constant 0 : i32
    return %arg0, %c0_i32 : i32, i32
  }
  func.func @transform_1(%arg0: i32, %arg1: memref<1xi32, #tpu.memory_space<smem>>) -> (i32, i32) {
    %c0_i32 = arith.constant 0 : i32
    %c0_i32_0 = arith.constant 0 : i32
    %c0_i32_1 = arith.constant 0 : i32
    return %c0_i32, %c0_i32_0 : i32, i32
  }
  func.func @transform_2(%arg0: i32, %arg1: memref<1xi32, #tpu.memory_space<smem>>) -> (i32, i32) {
    %c0_i32 = arith.constant 0 : i32
    %c0_i32_0 = arith.constant 0 : i32
    %c0_i32_1 = arith.constant 0 : i32
    return %c0_i32, %c0_i32_0 : i32, i32
  }
  func.func @transform_3(%arg0: i32, %arg1: memref<1xi32, #tpu.memory_space<smem>>) -> (i32, i32) {
    %c0_i32 = arith.constant 0 : i32
    %c0_i32_0 = arith.constant 0 : i32
    %c0_i32_1 = arith.constant 0 : i32
    return %c0_i32, %c0_i32_0 : i32, i32
  }
  func.func @transform_4(%arg0: i32, %arg1: memref<1xi32, #tpu.memory_space<smem>>) -> (i32, i32) {
    %c0_i32 = arith.constant 0 : i32
    %c0_i32_0 = arith.constant 0 : i32
    %c0_i32_1 = arith.constant 0 : i32
    return %c0_i32, %c0_i32_0 : i32, i32
  }
  func.func @transform_5(%arg0: i32, %arg1: memref<1xi32, #tpu.memory_space<smem>>) -> (i32, i32) {
    %c0_i32 = arith.constant 0 : i32
    %c0_i32_0 = arith.constant 0 : i32
    %c0_i32_1 = arith.constant 0 : i32
    return %c0_i32, %c0_i32_0 : i32, i32
  }
  func.func @transform_6(%arg0: i32, %arg1: memref<1xi32, #tpu.memory_space<smem>>) -> (i32, i32) {
    %c0_i32 = arith.constant 0 : i32
    %c0_i32_0 = arith.constant 0 : i32
    return %arg0, %c0_i32 : i32, i32
  }
}

</mosaic_0001>

<llo_original>
// kernel: tpu_custom_call.1
$region0: #{tpu_custom_call.1}
  #allocation0 [shape = 'u32[]', space=smem, size = 0x4, offset = 0x4, fixed_abs, tag = 'smem constant byte address 0x4 - core index']
  #allocation1 [shape = 'u32[144,128]{1,0:T(1,128)}', space=vmem, size = 0x12000, scoped, tag = 'internal scratch']
  #allocation2 [shape = 's32[1]{0}', space=sflag, size = 0x4, scoped, tag = 'scoped memory for tpu_custom_call.1']
  #allocation3 [shape = 's32[1]{0:T(128)S(6)}', space=smem, size = 0x200, scoped, tag = 'prefetched SMEM operand 0']
  %s0 = inlined_call_operand.<no memory space> [shape: s32[1], index: 0, kind: input, shape index: {}]
  %s1 = inlined_call_operand.vmem [shape: s32[512,1], index: 1, kind: input, shape index: {}]
  %s2 = inlined_call_operand.vmem [shape: bf16[512,256], index: 2, kind: input, shape index: {}]
  %s3 = inlined_call_operand.hbm [shape: bf16[256,256], index: 3, kind: input, shape index: {}]
  %s4 = inlined_call_operand.vmem [shape: f32[1,256], index: 4, kind: input, shape index: {}]
  %s5 = inlined_call_operand.hbm [shape: bf16[256,128], index: 5, kind: input, shape index: {}]
  %s6 = inlined_call_operand.vmem [shape: f32[1,128], index: 6, kind: input, shape index: {}]
  %s7 = inlined_call_operand.hbm [shape: bf16[512,128], index: 7, kind: output, shape index: {}]
  %s8 = sld [smem:[#allocation0]]
  $region73: #{tpu_custom_call.1} parent=0
    _
  %s10 = ssub.s32 1, %s8
  %s11 = scalar_select 0, %s10, %s8
  %12 = sst [smem:[#allocation3]] %s0
  $region1: #{tpu_custom_call.1} parent=0
    #allocation4 [shape = 'u8[131072]{0}', space=vmem, size = 0x20000, scoped, tag = 'input window, operand 3, single buffered']
    #allocation5 [shape = 's32[2]{0}', space=sflag, size = 0x8, scoped, tag = 'scoped memory for tpu_custom_call.1']
    #allocation6 [shape = 's32[2]{0}', space=sflag, size = 0x8, scoped, tag = 'scoped memory for tpu_custom_call.1']
    #allocation7 [shape = 'u8[65536]{0}', space=vmem, size = 0x10000, scoped, tag = 'input window, operand 5, single buffered']
    #allocation8 [shape = 's32[1]{0}', space=sflag, size = 0x4, scoped, tag = 'scoped memory for tpu_custom_call.1']
    #allocation9 [shape = 'u8[131072]{0}', space=vmem, size = 0x20000, scoped, tag = 'output window, operand 0']
    %13 = vsyncpa [#allocation5], 0
    %14 = vsyncpa [#allocation8], 0
    %15 = vsyncpa [#allocation6], 0
    %s16 = scalar_lea.sflag [#allocation6], 1
    %17 = vsyncpa %s16, 0
    loop: start=0, step=1, limit=4
    $region2: #{tpu_custom_call.1} parent=1 // loop_pre_header
      _
    $region3: #{tpu_custom_call.1} parent=1 // loop_header
      %s19 = sphi 0, %s23
      %p20 = scmp.ge.s32.totalorder %s19, 4
      %s29 = sphi 0, %s31
      %s32 = sphi 0, %s29
      %s33 = sphi 0, %s32
      %s49 = sphi 0, %s33
      %s53 = sphi 0, %s53
      %s55 = sphi 0, %s53
      %s56 = sphi 0, %s55
      %s70 = sphi 0, %s56
      %s74 = sphi 0, %s74
      %s76 = sphi 0, %s74
      %s77 = sphi 0, %s76
      %s91 = sphi 0, %s77
      %s95 = sphi 0, %s95
      %s97 = sphi 0, %s95
      %s98 = sphi 0, %s97
      %s112 = sphi 0, %s98
      %s116 = sphi 0, %s116
      %s118 = sphi 0, %s116
      %s119 = sphi 0, %s118
      %s133 = sphi 0, %s119
      %s137 = sphi 0, %s137
      %s139 = sphi 0, %s137
      %s140 = sphi 0, %s139
      %s154 = sphi 0, %s140
      %s160 = sphi 0, %s162
      %s163 = sphi 0, %s160
      %s164 = sphi 0, %s163
      %s180 = sphi 0, %s164
    $region4: #{tpu_custom_call.1} parent=1 // loop_header_branch
      %22 = sbr.rel (%p20) target = $region8
    $region5: #{tpu_custom_call.1} parent=1 // loop_body
      %s24 = ssub.s32 %s19, 1
      %s25 = ssub.s32 %s19, 2
      %s26 = sadd.s32 %s19, 1
      %s27 = ssub.s32 %s19, %s26
      %p28 = scmp.eq.s32.totalorder %s27, 0
      %s30 = sadd.s32 %s29, 1
      %s31 = scalar_select %p28, %s29, %s30
      %p34 = pneg %p28
      %p35 = scmp.eq.s32.totalorder %s19, 1
      %p36 = por %p34, %p35
      %p37 = scmp.ne.s32.totalorder %s29, %s32
      %p38 = scmp.eq.s32.totalorder %s19, 0
      %p39 = por %p37, %p38
      %p40 = scmp.ne.s32.totalorder %s29, %s32
      %p41 = scmp.eq.s32.totalorder %s24, 1
      %p42 = por %p40, %p41
      %p43 = scmp.ne.s32.totalorder %s32, %s33
      %p44 = scmp.eq.s32.totalorder %s24, 0
      %p45 = por %p43, %p44
      %p46 = scmp.ne.s32.totalorder %s32, %s33
      %p47 = scmp.eq.s32.totalorder %s25, 1
      %p48 = por %p46, %p47
      %p50 = scmp.ne.s32.totalorder %s33, %s49
      %p51 = scmp.eq.s32.totalorder %s25, 0
      %p52 = por %p50, %p51
      %s54 = sadd.s32 %s53, 1
      %p57 = scmp.eq.s32.totalorder %s19, 1
      %p58 = scmp.ne.s32.totalorder %s53, %s55
      %p59 = scmp.eq.s32.totalorder %s19, 0
      %p60 = por %p58, %p59
      %p61 = scmp.ne.s32.totalorder %s53, %s55
      %p62 = scmp.eq.s32.totalorder %s24, 1
      %p63 = por %p61, %p62
      %p64 = scmp.ne.s32.totalorder %s55, %s56
      %p65 = scmp.eq.s32.totalorder %s24, 0
      %p66 = por %p64, %p65
      %p67 = scmp.ne.s32.totalorder %s55, %s56
      %p68 = scmp.eq.s32.totalorder %s25, 1
      %p69 = por %p67, %p68
      %p71 = scmp.ne.s32.totalorder %s56, %s70
      %p72 = scmp.eq.s32.totalorder %s25, 0
      %p73 = por %p71, %p72
      %s75 = sadd.s32 %s74, 1
      %p78 = scmp.eq.s32.totalorder %s19, 1
      %p79 = scmp.ne.s32.totalorder %s74, %s76
      %p80 = scmp.eq.s32.totalorder %s19, 0
      %p81 = por %p79, %p80
      %p82 = scmp.ne.s32.totalorder %s74, %s76
      %p83 = scmp.eq.s32.totalorder %s24, 1
      %p84 = por %p82, %p83
      %p85 = scmp.ne.s32.totalorder %s76, %s77
      %p86 = scmp.eq.s32.totalorder %s24, 0
      %p87 = por %p85, %p86
      %p88 = scmp.ne.s32.totalorder %s76, %s77
      %p89 = scmp.eq.s32.totalorder %s25, 1
      %p90 = por %p88, %p89
      %p92 = scmp.ne.s32.totalorder %s77, %s91
      %p93 = scmp.eq.s32.totalorder %s25, 0
      %p94 = por %p92, %p93
      %s96 = sadd.s32 %s95, 1
      %p99 = scmp.eq.s32.totalorder %s19, 1
      %p100 = scmp.ne.s32.totalorder %s95, %s97
      %p101 = scmp.eq.s32.totalorder %s19, 0
      %p102 = por %p100, %p101
      %p103 = scmp.ne.s32.totalorder %s95, %s97
      %p104 = scmp.eq.s32.totalorder %s24, 1
      %p105 = por %p103, %p104
      %p106 = scmp.ne.s32.totalorder %s97, %s98
      %p107 = scmp.eq.s32.totalorder %s24, 0
      %p108 = por %p106, %p107
      %p109 = scmp.ne.s32.totalorder %s97, %s98
      %p110 = scmp.eq.s32.totalorder %s25, 1
      %p111 = por %p109, %p110
      %p113 = scmp.ne.s32.totalorder %s98, %s112
      %p114 = scmp.eq.s32.totalorder %s25, 0
      %p115 = por %p113, %p114
      %s117 = sadd.s32 %s116, 1
      %p120 = scmp.eq.s32.totalorder %s19, 1
      %p121 = scmp.ne.s32.totalorder %s116, %s118
      %p122 = scmp.eq.s32.totalorder %s19, 0
      %p123 = por %p121, %p122
      %p124 = scmp.ne.s32.totalorder %s116, %s118
      %p125 = scmp.eq.s32.totalorder %s24, 1
      %p126 = por %p124, %p125
      %p127 = scmp.ne.s32.totalorder %s118, %s119
      %p128 = scmp.eq.s32.totalorder %s24, 0
      %p129 = por %p127, %p128
      %p130 = scmp.ne.s32.totalorder %s118, %s119
      %p131 = scmp.eq.s32.totalorder %s25, 1
      %p132 = por %p130, %p131
      %p134 = scmp.ne.s32.totalorder %s119, %s133
      %p135 = scmp.eq.s32.totalorder %s25, 0
      %p136 = por %p134, %p135
      %s138 = sadd.s32 %s137, 1
      %p141 = scmp.eq.s32.totalorder %s19, 1
      %p142 = scmp.ne.s32.totalorder %s137, %s139
      %p143 = scmp.eq.s32.totalorder %s19, 0
      %p144 = por %p142, %p143
      %p145 = scmp.ne.s32.totalorder %s137, %s139
      %p146 = scmp.eq.s32.totalorder %s24, 1
      %p147 = por %p145, %p146
      %p148 = scmp.ne.s32.totalorder %s139, %s140
      %p149 = scmp.eq.s32.totalorder %s24, 0
      %p150 = por %p148, %p149
      %p151 = scmp.ne.s32.totalorder %s139, %s140
      %p152 = scmp.eq.s32.totalorder %s25, 1
      %p153 = por %p151, %p152
      %p155 = scmp.ne.s32.totalorder %s140, %s154
      %p156 = scmp.eq.s32.totalorder %s25, 0
      %p157 = por %p155, %p156
      %s158 = ssub.s32 %s19, %s26
      %p159 = scmp.eq.s32.totalorder %s158, 0
      %s161 = sadd.s32 %s160, 1
      %s162 = scalar_select %p159, %s160, %s161
      %p165 = pneg %p159
      %p166 = scmp.eq.s32.totalorder %s19, 1
      %p167 = por %p165, %p166
      %p168 = scmp.ne.s32.totalorder %s160, %s163
      %p169 = scmp.eq.s32.totalorder %s19, 0
      %p170 = por %p168, %p169
      %p171 = scmp.ne.s32.totalorder %s160, %s163
      %p172 = scmp.eq.s32.totalorder %s24, 1
      %p173 = por %p171, %p172
      %p174 = scmp.ne.s32.totalorder %s163, %s164
      %p175 = scmp.eq.s32.totalorder %s24, 0
      %p176 = por %p174, %p175
      %p177 = scmp.ne.s32.totalorder %s163, %s164
      %p178 = scmp.eq.s32.totalorder %s25, 1
      %p179 = por %p177, %p178
      %p181 = scmp.ne.s32.totalorder %s164, %s180
      %p182 = scmp.eq.s32.totalorder %s25, 0
      %p183 = por %p181, %p182
      %p184 = scmp.le.s32.totalorder 1, %s19
      %p185 = scmp.lt.s32.totalorder %s19, 3
      %p186 = pnand %p184, %p185
      %p187 = pneg %p186
      // Predicated region
      $region9: #{tpu_custom_call.1} parent=5 // pred_check
        _
      $region10: #{tpu_custom_call.1} parent=5 // pred_check_branch
        %189 = sbr.rel (%p186) target = $region12
      $region11: #{tpu_custom_call.1} parent=5 // pred_region
        %s190 = ssub.s32 %s19, 1
        // Predicated region
        $region13: #{tpu_custom_call.1} parent=11 // pred_check
          %p191 = pneg %p66
        $region14: #{tpu_custom_call.1} parent=11 // pred_check_branch
          %193 = sbr.rel (%p191) target = $region16
        $region15: #{tpu_custom_call.1} parent=11 // pred_region
          _
        $region16: #{tpu_custom_call.1} parent=11 // pred_fallthru
          _
        // Predicated region
        $region17: #{tpu_custom_call.1} parent=11 // pred_check
          %p194 = pneg %p87
        $region18: #{tpu_custom_call.1} parent=11 // pred_check_branch
          %196 = sbr.rel (%p194) target = $region20
        $region19: #{tpu_custom_call.1} parent=11 // pred_region
          %s198 = ssub.s32 4096, 4096
          %199 = vsyncadd [#allocation5], %s198
          %s200 = sshll.u32 [#allocation4], 4
          %s201 = int_to_ptr.vmem [resolvable:$true] %s200
          %206 = dma.hbm_to_vmem [thread:$0]  %s3, 4096, %s201, [#allocation5], 128, 128, 8
        $region20: #{tpu_custom_call.1} parent=11 // pred_fallthru
          _
        // Predicated region
        $region21: #{tpu_custom_call.1} parent=11 // pred_check
          %p207 = pneg %p108
        $region22: #{tpu_custom_call.1} parent=11 // pred_check_branch
          %209 = sbr.rel (%p207) target = $region24
        $region23: #{tpu_custom_call.1} parent=11 // pred_region
          _
        $region24: #{tpu_custom_call.1} parent=11 // pred_fallthru
          _
        // Predicated region
        $region25: #{tpu_custom_call.1} parent=11 // pred_check
          %p210 = pneg %p129
        $region26: #{tpu_custom_call.1} parent=11 // pred_check_branch
          %212 = sbr.rel (%p210) target = $region28
        $region27: #{tpu_custom_call.1} parent=11 // pred_region
          %s214 = ssub.s32 2048, 2048
          %215 = vsyncadd [#allocation8], %s214
          %s216 = sshll.u32 [#allocation7], 4
          %s217 = int_to_ptr.vmem [resolvable:$true] %s216
          %222 = dma.hbm_to_vmem [thread:$0]  %s5, 2048, %s217, [#allocation8], 64, 64, 4
        $region28: #{tpu_custom_call.1} parent=11 // pred_fallthru
          _
        // Predicated region
        $region29: #{tpu_custom_call.1} parent=11 // pred_check
          %p223 = pneg %p150
        $region30: #{tpu_custom_call.1} parent=11 // pred_check_branch
          %225 = sbr.rel (%p223) target = $region32
        $region31: #{tpu_custom_call.1} parent=11 // pred_region
          _
        $region32: #{tpu_custom_call.1} parent=11 // pred_fallthru
          _
      $region12: #{tpu_custom_call.1} parent=5 // pred_fallthru
        _
      %p226 = scmp.lt.s32.totalorder %s19, 2
      // Predicated region
      $region33: #{tpu_custom_call.1} parent=5 // pred_check
        %p227 = pneg %p226
      $region34: #{tpu_custom_call.1} parent=5 // pred_check_branch
        %229 = sbr.rel (%p227) target = $region36
      $region35: #{tpu_custom_call.1} parent=5 // pred_region
        // Predicated region
        $region37: #{tpu_custom_call.1} parent=35 // pred_check
          %p230 = pneg %p39
        $region38: #{tpu_custom_call.1} parent=35 // pred_check_branch
          %232 = sbr.rel (%p230) target = $region40
        $region39: #{tpu_custom_call.1} parent=35 // pred_region
          %s233 = smul.u32 32, %s19
          %p234 = scmp.lt.s32.totalorder %s233, 63
          %s235 = scalar_select %p234, %s233, 63
          %s236 = smul.addr %s235, 8
          %s237 = scalar_lea.vmem %s1, %s236
          %s238 = smul.u32 32, %s19
        $region40: #{tpu_custom_call.1} parent=35 // pred_fallthru
          _
      $region36: #{tpu_custom_call.1} parent=5 // pred_fallthru
        _
      %p239 = scmp.le.s32.totalorder 1, %s19
      %p240 = scmp.lt.s32.totalorder %s19, 3
      %p241 = pnand %p239, %p240
      %p242 = pneg %p241
      // Predicated region
      $region41: #{tpu_custom_call.1} parent=5 // pred_check
        _
      $region42: #{tpu_custom_call.1} parent=5 // pred_check_branch
        %244 = sbr.rel (%p241) target = $region44
      $region43: #{tpu_custom_call.1} parent=5 // pred_region
        %s245 = ssub.s32 %s19, 1
        // Predicated region
        $region45: #{tpu_custom_call.1} parent=43 // pred_check
          %p246 = pneg %p87
        $region46: #{tpu_custom_call.1} parent=43 // pred_check_branch
          %248 = sbr.rel (%p246) target = $region48
        $region47: #{tpu_custom_call.1} parent=43 // pred_region
          %249 = dma.done [#allocation5], 4096
        $region48: #{tpu_custom_call.1} parent=43 // pred_fallthru
          _
        // Predicated region
        $region49: #{tpu_custom_call.1} parent=43 // pred_check
          %p250 = pneg %p129
        $region50: #{tpu_custom_call.1} parent=43 // pred_check_branch
          %252 = sbr.rel (%p250) target = $region52
        $region51: #{tpu_custom_call.1} parent=43 // pred_region
          %253 = dma.done [#allocation8], 2048
        $region52: #{tpu_custom_call.1} parent=43 // pred_fallthru
          _
        %s254 = smul.u32 32, %s24
        %p255 = scmp.lt.s32.totalorder %s254, 63
        %s256 = scalar_select %p255, %s254, 63
        %s257 = smul.addr %s256, 8
        %s258 = scalar_lea.vmem %s1, %s257
        %p259 = pneg %p45
        %p260 = pneg %p42
        %p261 = pneg %p66
        %p262 = pneg %p63
        %p263 = pneg %p87
        %p264 = pneg %p84
        %p265 = pneg %p108
        %p266 = pneg %p105
        %p267 = pneg %p129
        %p268 = pneg %p126
        %p269 = pneg %p150
        %p270 = pneg %p147
        %p271 = pneg %p176
        %p272 = pneg %p173
        %s273 = sand.u32 %s163, 1
        %s274 = scalar_lea.sflag [#allocation6], %s273
        %s275 = sand.u32 %s163, 1
        %s276 = smul.addr %s275, 128
        %s277 = scalar_lea.vmem [#allocation9], %s276
        %s278 = smul.u32 32, %s24
        %p279 = scmp.lt.s32.totalorder %s278, 63
        %s280 = scalar_select %p279, %s278, 63
        %s281 = smul.addr %s280, 8
        %s282 = scalar_lea.vmem %s1, %s281
        %s283 = smul.u32 32, %s24
        %s284 = smul.u32 32, %s24
        %s286 = sld [smem:[#allocation3]]
        %s287 = smul.u32 %s24, 256
        %p288 = scmp.lt.s32.totalorder %s287, %s286
        // Predicated region
        $region53: #{tpu_custom_call.1} parent=43 // pred_check
          %p289 = pneg %p288
        $region54: #{tpu_custom_call.1} parent=43 // pred_check_branch
          %291 = sbr.rel (%p289) target = $region56
        $region55: #{tpu_custom_call.1} parent=43 // pred_region
          %v292 = vld [vmem:[%s282] sm:$0xff]
          %v293 = vld [vmem:[%s282 + $0x8] sm:$0xff]
          %v294 = vld [vmem:[%s282 + $0x10] sm:$0xff]
          %v295 = vld [vmem:[%s282 + $0x18] sm:$0xff]
          %v296 = vld [vmem:[%s282 + $0x20] sm:$0xff]
          %v297 = vld [vmem:[%s282 + $0x28] sm:$0xff]
          %v298 = vld [vmem:[%s282 + $0x30] sm:$0xff]
          %v299 = vld [vmem:[%s282 + $0x38] sm:$0xff]
          %v300 = vld [vmem:[%s282 + $0x40] sm:$0xff]
          %v301 = vld [vmem:[%s282 + $0x48] sm:$0xff]
          %v302 = vld [vmem:[%s282 + $0x50] sm:$0xff]
          %v303 = vld [vmem:[%s282 + $0x58] sm:$0xff]
          %v304 = vld [vmem:[%s282 + $0x60] sm:$0xff]
          %v305 = vld [vmem:[%s282 + $0x68] sm:$0xff]
          %v306 = vld [vmem:[%s282 + $0x70] sm:$0xff]
          %v307 = vld [vmem:[%s282 + $0x78] sm:$0xff]
          %v308 = vld [vmem:[%s282 + $0x80] sm:$0xff]
          %v309 = vld [vmem:[%s282 + $0x88] sm:$0xff]
          %v310 = vld [vmem:[%s282 + $0x90] sm:$0xff]
          %v311 = vld [vmem:[%s282 + $0x98] sm:$0xff]
          %v312 = vld [vmem:[%s282 + $0xa0] sm:$0xff]
          %v313 = vld [vmem:[%s282 + $0xa8] sm:$0xff]
          %v314 = vld [vmem:[%s282 + $0xb0] sm:$0xff]
          %v315 = vld [vmem:[%s282 + $0xb8] sm:$0xff]
          %v316 = vld [vmem:[%s282 + $0xc0] sm:$0xff]
          %v317 = vld [vmem:[%s282 + $0xc8] sm:$0xff]
          %v318 = vld [vmem:[%s282 + $0xd0] sm:$0xff]
          %v319 = vld [vmem:[%s282 + $0xd8] sm:$0xff]
          %v320 = vld [vmem:[%s282 + $0xe0] sm:$0xff]
          %v321 = vld [vmem:[%s282 + $0xe8] sm:$0xff]
          %v322 = vld [vmem:[%s282 + $0xf0] sm:$0xff]
          %v323 = vld [vmem:[%s282 + $0xf8] sm:$0xff]
          %v324 = vand.u32 %v292, 1
          %v325 = vand.u32 %v293, 1
          %v326 = vand.u32 %v294, 1
          %v327 = vand.u32 %v295, 1
          %v328 = vand.u32 %v296, 1
          %v329 = vand.u32 %v297, 1
          %v330 = vand.u32 %v298, 1
          %v331 = vand.u32 %v299, 1
          %v332 = vand.u32 %v300, 1
          %v333 = vand.u32 %v301, 1
          %v334 = vand.u32 %v302, 1
          %v335 = vand.u32 %v303, 1
          %v336 = vand.u32 %v304, 1
          %v337 = vand.u32 %v305, 1
          %v338 = vand.u32 %v306, 1
          %v339 = vand.u32 %v307, 1
          %v340 = vand.u32 %v308, 1
          %v341 = vand.u32 %v309, 1
          %v342 = vand.u32 %v310, 1
          %v343 = vand.u32 %v311, 1
          %v344 = vand.u32 %v312, 1
          %v345 = vand.u32 %v313, 1
          %v346 = vand.u32 %v314, 1
          %v347 = vand.u32 %v315, 1
          %v348 = vand.u32 %v316, 1
          %v349 = vand.u32 %v317, 1
          %v350 = vand.u32 %v318, 1
          %v351 = vand.u32 %v319, 1
          %v352 = vand.u32 %v320, 1
          %v353 = vand.u32 %v321, 1
          %v354 = vand.u32 %v322, 1
          %v355 = vand.u32 %v323, 1
          %v356 = vcvt.s32.f32 %v324
          %v357 = vcvt.s32.f32 %v325
          %v358 = vcvt.s32.f32 %v326
          %v359 = vcvt.s32.f32 %v327
          %v360 = vcvt.s32.f32 %v328
          %v361 = vcvt.s32.f32 %v329
          %v362 = vcvt.s32.f32 %v330
          %v363 = vcvt.s32.f32 %v331
          %v364 = vcvt.s32.f32 %v332
          %v365 = vcvt.s32.f32 %v333
          %v366 = vcvt.s32.f32 %v334
          %v367 = vcvt.s32.f32 %v335
          %v368 = vcvt.s32.f32 %v336
          %v369 = vcvt.s32.f32 %v337
          %v370 = vcvt.s32.f32 %v338
          %v371 = vcvt.s32.f32 %v339
          %v372 = vcvt.s32.f32 %v340
          %v373 = vcvt.s32.f32 %v341
          %v374 = vcvt.s32.f32 %v342
          %v375 = vcvt.s32.f32 %v343
          %v376 = vcvt.s32.f32 %v344
          %v377 = vcvt.s32.f32 %v345
          %v378 = vcvt.s32.f32 %v346
          %v379 = vcvt.s32.f32 %v347
          %v380 = vcvt.s32.f32 %v348
          %v381 = vcvt.s32.f32 %v349
          %v382 = vcvt.s32.f32 %v350
          %v383 = vcvt.s32.f32 %v351
          %v384 = vcvt.s32.f32 %v352
          %v385 = vcvt.s32.f32 %v353
          %v386 = vcvt.s32.f32 %v354
          %v387 = vcvt.s32.f32 %v355
          %v388 = vshra.s32 %v292, 1
          %v389 = vshra.s32 %v293, 1
          %v390 = vshra.s32 %v294, 1
          %v391 = vshra.s32 %v295, 1
          %v392 = vshra.s32 %v296, 1
          %v393 = vshra.s32 %v297, 1
          %v394 = vshra.s32 %v298, 1
          %v395 = vshra.s32 %v299, 1
          %v396 = vshra.s32 %v300, 1
          %v397 = vshra.s32 %v301, 1
          %v398 = vshra.s32 %v302, 1
          %v399 = vshra.s32 %v303, 1
          %v400 = vshra.s32 %v304, 1
          %v401 = vshra.s32 %v305, 1
          %v402 = vshra.s32 %v306, 1
          %v403 = vshra.s32 %v307, 1
          %v404 = vshra.s32 %v308, 1
          %v405 = vshra.s32 %v309, 1
          %v406 = vshra.s32 %v310, 1
          %v407 = vshra.s32 %v311, 1
          %v408 = vshra.s32 %v312, 1
          %v409 = vshra.s32 %v313, 1
          %v410 = vshra.s32 %v314, 1
          %v411 = vshra.s32 %v315, 1
          %v412 = vshra.s32 %v316, 1
          %v413 = vshra.s32 %v317, 1
          %v414 = vshra.s32 %v318, 1
          %v415 = vshra.s32 %v319, 1
          %v416 = vshra.s32 %v320, 1
          %v417 = vshra.s32 %v321, 1
          %v418 = vshra.s32 %v322, 1
          %v419 = vshra.s32 %v323, 1
          %v420 = vlaneseq
          %v421 = vand.u32 %v420, 127
          %v422 = vadd.s32 %v421, 128
          %v423 = vadd.s32 %v421, 256
          %v424 = vadd.s32 %v421, 384
          %425 = vset.pattern.permute.xlu0 0
          %426 = vperm.xlu0 %425, %v388
          %v427 = vpop.permute.xlu0 %426
          %428 = vset.pattern.permute.xlu0 0
          %429 = vperm.xlu0 %428, %v389
          %v430 = vpop.permute.xlu0 %429
          %431 = vset.pattern.permute.xlu0 0
          %432 = vperm.xlu0 %431, %v390
          %v433 = vpop.permute.xlu0 %432
          %434 = vset.pattern.permute.xlu0 0
          %435 = vperm.xlu0 %434, %v391
          %v436 = vpop.permute.xlu0 %435
          %437 = vset.pattern.permute.xlu0 0
          %438 = vperm.xlu0 %437, %v392
          %v439 = vpop.permute.xlu0 %438
          %440 = vset.pattern.permute.xlu0 0
          %441 = vperm.xlu0 %440, %v393
          %v442 = vpop.permute.xlu0 %441
          %443 = vset.pattern.permute.xlu0 0
          %444 = vperm.xlu0 %443, %v394
          %v445 = vpop.permute.xlu0 %444
          %446 = vset.pattern.permute.xlu0 0
          %447 = vperm.xlu0 %446, %v395
          %v448 = vpop.permute.xlu0 %447
          %449 = vset.pattern.permute.xlu0 0
          %450 = vperm.xlu0 %449, %v396
          %v451 = vpop.permute.xlu0 %450
          %452 = vset.pattern.permute.xlu0 0
          %453 = vperm.xlu0 %452, %v397
          %v454 = vpop.permute.xlu0 %453
          %455 = vset.pattern.permute.xlu0 0
          %456 = vperm.xlu0 %455, %v398
          %v457 = vpop.permute.xlu0 %456
          %458 = vset.pattern.permute.xlu0 0
          %459 = vperm.xlu0 %458, %v399
          %v460 = vpop.permute.xlu0 %459
          %461 = vset.pattern.permute.xlu0 0
          %462 = vperm.xlu0 %461, %v400
          %v463 = vpop.permute.xlu0 %462
          %464 = vset.pattern.permute.xlu0 0
          %465 = vperm.xlu0 %464, %v401
          %v466 = vpop.permute.xlu0 %465
          %467 = vset.pattern.permute.xlu0 0
          %468 = vperm.xlu0 %467, %v402
          %v469 = vpop.permute.xlu0 %468
          %470 = vset.pattern.permute.xlu0 0
          %471 = vperm.xlu0 %470, %v403
          %v472 = vpop.permute.xlu0 %471
          %473 = vset.pattern.permute.xlu0 0
          %474 = vperm.xlu0 %473, %v404
          %v475 = vpop.permute.xlu0 %474
          %476 = vset.pattern.permute.xlu0 0
          %477 = vperm.xlu0 %476, %v405
          %v478 = vpop.permute.xlu0 %477
          %479 = vset.pattern.permute.xlu0 0
          %480 = vperm.xlu0 %479, %v406
          %v481 = vpop.permute.xlu0 %480
          %482 = vset.pattern.permute.xlu0 0
          %483 = vperm.xlu0 %482, %v407
          %v484 = vpop.permute.xlu0 %483
          %485 = vset.pattern.permute.xlu0 0
          %486 = vperm.xlu0 %485, %v408
          %v487 = vpop.permute.xlu0 %486
          %488 = vset.pattern.permute.xlu0 0
          %489 = vperm.xlu0 %488, %v409
          %v490 = vpop.permute.xlu0 %489
          %491 = vset.pattern.permute.xlu0 0
          %492 = vperm.xlu0 %491, %v410
          %v493 = vpop.permute.xlu0 %492
          %494 = vset.pattern.permute.xlu0 0
          %495 = vperm.xlu0 %494, %v411
          %v496 = vpop.permute.xlu0 %495
          %497 = vset.pattern.permute.xlu0 0
          %498 = vperm.xlu0 %497, %v412
          %v499 = vpop.permute.xlu0 %498
          %500 = vset.pattern.permute.xlu0 0
          %501 = vperm.xlu0 %500, %v413
          %v502 = vpop.permute.xlu0 %501
          %503 = vset.pattern.permute.xlu0 0
          %504 = vperm.xlu0 %503, %v414
          %v505 = vpop.permute.xlu0 %504
          %506 = vset.pattern.permute.xlu0 0
          %507 = vperm.xlu0 %506, %v415
          %v508 = vpop.permute.xlu0 %507
          %509 = vset.pattern.permute.xlu0 0
          %510 = vperm.xlu0 %509, %v416
          %v511 = vpop.permute.xlu0 %510
          %512 = vset.pattern.permute.xlu0 0
          %513 = vperm.xlu0 %512, %v417
          %v514 = vpop.permute.xlu0 %513
          %515 = vset.pattern.permute.xlu0 0
          %516 = vperm.xlu0 %515, %v418
          %v517 = vpop.permute.xlu0 %516
          %518 = vset.pattern.permute.xlu0 0
          %519 = vperm.xlu0 %518, %v419
          %v520 = vpop.permute.xlu0 %519
          %vm521 = vcmp.eq.s32.totalorder %v421, %v427
          %vm522 = vcmp.eq.s32.totalorder %v422, %v427
          %vm523 = vcmp.eq.s32.totalorder %v423, %v427
          %vm524 = vcmp.eq.s32.totalorder %v424, %v427
          %vm525 = vcmp.eq.s32.totalorder %v421, %v430
          %vm526 = vcmp.eq.s32.totalorder %v422, %v430
          %vm527 = vcmp.eq.s32.totalorder %v423, %v430
          %vm528 = vcmp.eq.s32.totalorder %v424, %v430
          %vm529 = vcmp.eq.s32.totalorder %v421, %v433
          %vm530 = vcmp.eq.s32.totalorder %v422, %v433
          %vm531 = vcmp.eq.s32.totalorder %v423, %v433
          %vm532 = vcmp.eq.s32.totalorder %v424, %v433
          %vm533 = vcmp.eq.s32.totalorder %v421, %v436
          %vm534 = vcmp.eq.s32.totalorder %v422, %v436
          %vm535 = vcmp.eq.s32.totalorder %v423, %v436
          %vm536 = vcmp.eq.s32.totalorder %v424, %v436
          %vm537 = vcmp.eq.s32.totalorder %v421, %v439
          %vm538 = vcmp.eq.s32.totalorder %v422, %v439
          %vm539 = vcmp.eq.s32.totalorder %v423, %v439
          %vm540 = vcmp.eq.s32.totalorder %v424, %v439
          %vm541 = vcmp.eq.s32.totalorder %v421, %v442
          %vm542 = vcmp.eq.s32.totalorder %v422, %v442
          %vm543 = vcmp.eq.s32.totalorder %v423, %v442
          %vm544 = vcmp.eq.s32.totalorder %v424, %v442
          %vm545 = vcmp.eq.s32.totalorder %v421, %v445
          %vm546 = vcmp.eq.s32.totalorder %v422, %v445
          %vm547 = vcmp.eq.s32.totalorder %v423, %v445
          %vm548 = vcmp.eq.s32.totalorder %v424, %v445
          %vm549 = vcmp.eq.s32.totalorder %v421, %v448
          %vm550 = vcmp.eq.s32.totalorder %v422, %v448
          %vm551 = vcmp.eq.s32.totalorder %v423, %v448
          %vm552 = vcmp.eq.s32.totalorder %v424, %v448
          %vm553 = vcmp.eq.s32.totalorder %v421, %v451
          %vm554 = vcmp.eq.s32.totalorder %v422, %v451
          %vm555 = vcmp.eq.s32.totalorder %v423, %v451
          %vm556 = vcmp.eq.s32.totalorder %v424, %v451
          %vm557 = vcmp.eq.s32.totalorder %v421, %v454
          %vm558 = vcmp.eq.s32.totalorder %v422, %v454
          %vm559 = vcmp.eq.s32.totalorder %v423, %v454
          %vm560 = vcmp.eq.s32.totalorder %v424, %v454
          %vm561 = vcmp.eq.s32.totalorder %v421, %v457
          %vm562 = vcmp.eq.s32.totalorder %v422, %v457
          %vm563 = vcmp.eq.s32.totalorder %v423, %v457
          %vm564 = vcmp.eq.s32.totalorder %v424, %v457
          %vm565 = vcmp.eq.s32.totalorder %v421, %v460
          %vm566 = vcmp.eq.s32.totalorder %v422, %v460
          %vm567 = vcmp.eq.s32.totalorder %v423, %v460
          %vm568 = vcmp.eq.s32.totalorder %v424, %v460
          %vm569 = vcmp.eq.s32.totalorder %v421, %v463
          %vm570 = vcmp.eq.s32.totalorder %v422, %v463
          %vm571 = vcmp.eq.s32.totalorder %v423, %v463
          %vm572 = vcmp.eq.s32.totalorder %v424, %v463
          %vm573 = vcmp.eq.s32.totalorder %v421, %v466
          %vm574 = vcmp.eq.s32.totalorder %v422, %v466
          %vm575 = vcmp.eq.s32.totalorder %v423, %v466
          %vm576 = vcmp.eq.s32.totalorder %v424, %v466
          %vm577 = vcmp.eq.s32.totalorder %v421, %v469
          %vm578 = vcmp.eq.s32.totalorder %v422, %v469
          %vm579 = vcmp.eq.s32.totalorder %v423, %v469
          %vm580 = vcmp.eq.s32.totalorder %v424, %v469
          %vm581 = vcmp.eq.s32.totalorder %v421, %v472
          %vm582 = vcmp.eq.s32.totalorder %v422, %v472
          %vm583 = vcmp.eq.s32.totalorder %v423, %v472
          %vm584 = vcmp.eq.s32.totalorder %v424, %v472
          %vm585 = vcmp.eq.s32.totalorder %v421, %v475
          %vm586 = vcmp.eq.s32.totalorder %v422, %v475
          %vm587 = vcmp.eq.s32.totalorder %v423, %v475
          %vm588 = vcmp.eq.s32.totalorder %v424, %v475
          %vm589 = vcmp.eq.s32.totalorder %v421, %v478
          %vm590 = vcmp.eq.s32.totalorder %v422, %v478
          %vm591 = vcmp.eq.s32.totalorder %v423, %v478
          %vm592 = vcmp.eq.s32.totalorder %v424, %v478
          %vm593 = vcmp.eq.s32.totalorder %v421, %v481
          %vm594 = vcmp.eq.s32.totalorder %v422, %v481
          %vm595 = vcmp.eq.s32.totalorder %v423, %v481
          %vm596 = vcmp.eq.s32.totalorder %v424, %v481
          %vm597 = vcmp.eq.s32.totalorder %v421, %v484
          %vm598 = vcmp.eq.s32.totalorder %v422, %v484
          %vm599 = vcmp.eq.s32.totalorder %v423, %v484
          %vm600 = vcmp.eq.s32.totalorder %v424, %v484
          %vm601 = vcmp.eq.s32.totalorder %v421, %v487
          %vm602 = vcmp.eq.s32.totalorder %v422, %v487
          %vm603 = vcmp.eq.s32.totalorder %v423, %v487
          %vm604 = vcmp.eq.s32.totalorder %v424, %v487
          %vm605 = vcmp.eq.s32.totalorder %v421, %v490
          %vm606 = vcmp.eq.s32.totalorder %v422, %v490
          %vm607 = vcmp.eq.s32.totalorder %v423, %v490
          %vm608 = vcmp.eq.s32.totalorder %v424, %v490
          %vm609 = vcmp.eq.s32.totalorder %v421, %v493
          %vm610 = vcmp.eq.s32.totalorder %v422, %v493
          %vm611 = vcmp.eq.s32.totalorder %v423, %v493
          %vm612 = vcmp.eq.s32.totalorder %v424, %v493
          %vm613 = vcmp.eq.s32.totalorder %v421, %v496
          %vm614 = vcmp.eq.s32.totalorder %v422, %v496
          %vm615 = vcmp.eq.s32.totalorder %v423, %v496
          %vm616 = vcmp.eq.s32.totalorder %v424, %v496
          %vm617 = vcmp.eq.s32.totalorder %v421, %v499
          %vm618 = vcmp.eq.s32.totalorder %v422, %v499
          %vm619 = vcmp.eq.s32.totalorder %v423, %v499
          %vm620 = vcmp.eq.s32.totalorder %v424, %v499
          %vm621 = vcmp.eq.s32.totalorder %v421, %v502
          %vm622 = vcmp.eq.s32.totalorder %v422, %v502
          %vm623 = vcmp.eq.s32.totalorder %v423, %v502
          %vm624 = vcmp.eq.s32.totalorder %v424, %v502
          %vm625 = vcmp.eq.s32.totalorder %v421, %v505
          %vm626 = vcmp.eq.s32.totalorder %v422, %v505
          %vm627 = vcmp.eq.s32.totalorder %v423, %v505
          %vm628 = vcmp.eq.s32.totalorder %v424, %v505
          %vm629 = vcmp.eq.s32.totalorder %v421, %v508
          %vm630 = vcmp.eq.s32.totalorder %v422, %v508
          %vm631 = vcmp.eq.s32.totalorder %v423, %v508
          %vm632 = vcmp.eq.s32.totalorder %v424, %v508
          %vm633 = vcmp.eq.s32.totalorder %v421, %v511
          %vm634 = vcmp.eq.s32.totalorder %v422, %v511
          %vm635 = vcmp.eq.s32.totalorder %v423, %v511
          %vm636 = vcmp.eq.s32.totalorder %v424, %v511
          %vm637 = vcmp.eq.s32.totalorder %v421, %v514
          %vm638 = vcmp.eq.s32.totalorder %v422, %v514
          %vm639 = vcmp.eq.s32.totalorder %v423, %v514
          %vm640 = vcmp.eq.s32.totalorder %v424, %v514
          %vm641 = vcmp.eq.s32.totalorder %v421, %v517
          %vm642 = vcmp.eq.s32.totalorder %v422, %v517
          %vm643 = vcmp.eq.s32.totalorder %v423, %v517
          %vm644 = vcmp.eq.s32.totalorder %v424, %v517
          %vm645 = vcmp.eq.s32.totalorder %v421, %v520
          %vm646 = vcmp.eq.s32.totalorder %v422, %v520
          %vm647 = vcmp.eq.s32.totalorder %v423, %v520
          %vm648 = vcmp.eq.s32.totalorder %v424, %v520
          %v649 = vsel %vm521, 1, 0
          %v650 = vsel %vm522, 1, 0
          %v651 = vsel %vm523, 1, 0
          %v652 = vsel %vm524, 1, 0
          %v653 = vsel %vm525, 1, 0
          %v654 = vsel %vm526, 1, 0
          %v655 = vsel %vm527, 1, 0
          %v656 = vsel %vm528, 1, 0
          %v657 = vsel %vm529, 1, 0
          %v658 = vsel %vm530, 1, 0
          %v659 = vsel %vm531, 1, 0
          %v660 = vsel %vm532, 1, 0
          %v661 = vsel %vm533, 1, 0
          %v662 = vsel %vm534, 1, 0
          %v663 = vsel %vm535, 1, 0
          %v664 = vsel %vm536, 1, 0
          %v665 = vsel %vm537, 1, 0
          %v666 = vsel %vm538, 1, 0
          %v667 = vsel %vm539, 1, 0
          %v668 = vsel %vm540, 1, 0
          %v669 = vsel %vm541, 1, 0
          %v670 = vsel %vm542, 1, 0
          %v671 = vsel %vm543, 1, 0
          %v672 = vsel %vm544, 1, 0
          %v673 = vsel %vm545, 1, 0
          %v674 = vsel %vm546, 1, 0
          %v675 = vsel %vm547, 1, 0
          %v676 = vsel %vm548, 1, 0
          %v677 = vsel %vm549, 1, 0
          %v678 = vsel %vm550, 1, 0
          %v679 = vsel %vm551, 1, 0
          %v680 = vsel %vm552, 1, 0
          %v681 = vsel %vm553, 1, 0
          %v682 = vsel %vm554, 1, 0
          %v683 = vsel %vm555, 1, 0
          %v684 = vsel %vm556, 1, 0
          %v685 = vsel %vm557, 1, 0
          %v686 = vsel %vm558, 1, 0
          %v687 = vsel %vm559, 1, 0
          %v688 = vsel %vm560, 1, 0
          %v689 = vsel %vm561, 1, 0
          %v690 = vsel %vm562, 1, 0
          %v691 = vsel %vm563, 1, 0
          %v692 = vsel %vm564, 1, 0
          %v693 = vsel %vm565, 1, 0
          %v694 = vsel %vm566, 1, 0
          %v695 = vsel %vm567, 1, 0
          %v696 = vsel %vm568, 1, 0
          %v697 = vsel %vm569, 1, 0
          %v698 = vsel %vm570, 1, 0
          %v699 = vsel %vm571, 1, 0
          %v700 = vsel %vm572, 1, 0
          %v701 = vsel %vm573, 1, 0
          %v702 = vsel %vm574, 1, 0
          %v703 = vsel %vm575, 1, 0
          %v704 = vsel %vm576, 1, 0
          %v705 = vsel %vm577, 1, 0
          %v706 = vsel %vm578, 1, 0
          %v707 = vsel %vm579, 1, 0
          %v708 = vsel %vm580, 1, 0
          %v709 = vsel %vm581, 1, 0
          %v710 = vsel %vm582, 1, 0
          %v711 = vsel %vm583, 1, 0
          %v712 = vsel %vm584, 1, 0
          %v713 = vsel %vm585, 1, 0
          %v714 = vsel %vm586, 1, 0
          %v715 = vsel %vm587, 1, 0
          %v716 = vsel %vm588, 1, 0
          %v717 = vsel %vm589, 1, 0
          %v718 = vsel %vm590, 1, 0
          %v719 = vsel %vm591, 1, 0
          %v720 = vsel %vm592, 1, 0
          %v721 = vsel %vm593, 1, 0
          %v722 = vsel %vm594, 1, 0
          %v723 = vsel %vm595, 1, 0
          %v724 = vsel %vm596, 1, 0
          %v725 = vsel %vm597, 1, 0
          %v726 = vsel %vm598, 1, 0
          %v727 = vsel %vm599, 1, 0
          %v728 = vsel %vm600, 1, 0
          %v729 = vsel %vm601, 1, 0
          %v730 = vsel %vm602, 1, 0
          %v731 = vsel %vm603, 1, 0
          %v732 = vsel %vm604, 1, 0
          %v733 = vsel %vm605, 1, 0
          %v734 = vsel %vm606, 1, 0
          %v735 = vsel %vm607, 1, 0
          %v736 = vsel %vm608, 1, 0
          %v737 = vsel %vm609, 1, 0
          %v738 = vsel %vm610, 1, 0
          %v739 = vsel %vm611, 1, 0
          %v740 = vsel %vm612, 1, 0
          %v741 = vsel %vm613, 1, 0
          %v742 = vsel %vm614, 1, 0
          %v743 = vsel %vm615, 1, 0
          %v744 = vsel %vm616, 1, 0
          %v745 = vsel %vm617, 1, 0
          %v746 = vsel %vm618, 1, 0
          %v747 = vsel %vm619, 1, 0
          %v748 = vsel %vm620, 1, 0
          %v749 = vsel %vm621, 1, 0
          %v750 = vsel %vm622, 1, 0
          %v751 = vsel %vm623, 1, 0
          %v752 = vsel %vm624, 1, 0
          %v753 = vsel %vm625, 1, 0
          %v754 = vsel %vm626, 1, 0
          %v755 = vsel %vm627, 1, 0
          %v756 = vsel %vm628, 1, 0
          %v757 = vsel %vm629, 1, 0
          %v758 = vsel %vm630, 1, 0
          %v759 = vsel %vm631, 1, 0
          %v760 = vsel %vm632, 1, 0
          %v761 = vsel %vm633, 1, 0
          %v762 = vsel %vm634, 1, 0
          %v763 = vsel %vm635, 1, 0
          %v764 = vsel %vm636, 1, 0
          %v765 = vsel %vm637, 1, 0
          %v766 = vsel %vm638, 1, 0
          %v767 = vsel %vm639, 1, 0
          %v768 = vsel %vm640, 1, 0
          %v769 = vsel %vm641, 1, 0
          %v770 = vsel %vm642, 1, 0
          %v771 = vsel %vm643, 1, 0
          %v772 = vsel %vm644, 1, 0
          %v773 = vsel %vm645, 1, 0
          %v774 = vsel %vm646, 1, 0
          %v775 = vsel %vm647, 1, 0
          %v776 = vsel %vm648, 1, 0
          %v777 = vcvt.s32.f32 %v649
          %v778 = vcvt.s32.f32 %v650
          %v779 = vcvt.s32.f32 %v651
          %v780 = vcvt.s32.f32 %v652
          %v781 = vcvt.s32.f32 %v653
          %v782 = vcvt.s32.f32 %v654
          %v783 = vcvt.s32.f32 %v655
          %v784 = vcvt.s32.f32 %v656
          %v785 = vcvt.s32.f32 %v657
          %v786 = vcvt.s32.f32 %v658
          %v787 = vcvt.s32.f32 %v659
          %v788 = vcvt.s32.f32 %v660
          %v789 = vcvt.s32.f32 %v661
          %v790 = vcvt.s32.f32 %v662
          %v791 = vcvt.s32.f32 %v663
          %v792 = vcvt.s32.f32 %v664
          %v793 = vcvt.s32.f32 %v665
          %v794 = vcvt.s32.f32 %v666
          %v795 = vcvt.s32.f32 %v667
          %v796 = vcvt.s32.f32 %v668
          %v797 = vcvt.s32.f32 %v669
          %v798 = vcvt.s32.f32 %v670
          %v799 = vcvt.s32.f32 %v671
          %v800 = vcvt.s32.f32 %v672
          %v801 = vcvt.s32.f32 %v673
          %v802 = vcvt.s32.f32 %v674
          %v803 = vcvt.s32.f32 %v675
          %v804 = vcvt.s32.f32 %v676
          %v805 = vcvt.s32.f32 %v677
          %v806 = vcvt.s32.f32 %v678
          %v807 = vcvt.s32.f32 %v679
          %v808 = vcvt.s32.f32 %v680
          %v809 = vcvt.s32.f32 %v681
          %v810 = vcvt.s32.f32 %v682
          %v811 = vcvt.s32.f32 %v683
          %v812 = vcvt.s32.f32 %v684
          %v813 = vcvt.s32.f32 %v685
          %v814 = vcvt.s32.f32 %v686
          %v815 = vcvt.s32.f32 %v687
          %v816 = vcvt.s32.f32 %v688
          %v817 = vcvt.s32.f32 %v689
          %v818 = vcvt.s32.f32 %v690
          %v819 = vcvt.s32.f32 %v691
          %v820 = vcvt.s32.f32 %v692
          %v821 = vcvt.s32.f32 %v693
          %v822 = vcvt.s32.f32 %v694
          %v823 = vcvt.s32.f32 %v695
          %v824 = vcvt.s32.f32 %v696
          %v825 = vcvt.s32.f32 %v697
          %v826 = vcvt.s32.f32 %v698
          %v827 = vcvt.s32.f32 %v699
          %v828 = vcvt.s32.f32 %v700
          %v829 = vcvt.s32.f32 %v701
          %v830 = vcvt.s32.f32 %v702
          %v831 = vcvt.s32.f32 %v703
          %v832 = vcvt.s32.f32 %v704
          %v833 = vcvt.s32.f32 %v705
          %v834 = vcvt.s32.f32 %v706
          %v835 = vcvt.s32.f32 %v707
          %v836 = vcvt.s32.f32 %v708
          %v837 = vcvt.s32.f32 %v709
          %v838 = vcvt.s32.f32 %v710
          %v839 = vcvt.s32.f32 %v711
          %v840 = vcvt.s32.f32 %v712
          %v841 = vcvt.s32.f32 %v713
          %v842 = vcvt.s32.f32 %v714
          %v843 = vcvt.s32.f32 %v715
          %v844 = vcvt.s32.f32 %v716
          %v845 = vcvt.s32.f32 %v717
          %v846 = vcvt.s32.f32 %v718
          %v847 = vcvt.s32.f32 %v719
          %v848 = vcvt.s32.f32 %v720
          %v849 = vcvt.s32.f32 %v721
          %v850 = vcvt.s32.f32 %v722
          %v851 = vcvt.s32.f32 %v723
          %v852 = vcvt.s32.f32 %v724
          %v853 = vcvt.s32.f32 %v725
          %v854 = vcvt.s32.f32 %v726
          %v855 = vcvt.s32.f32 %v727
          %v856 = vcvt.s32.f32 %v728
          %v857 = vcvt.s32.f32 %v729
          %v858 = vcvt.s32.f32 %v730
          %v859 = vcvt.s32.f32 %v731
          %v860 = vcvt.s32.f32 %v732
          %v861 = vcvt.s32.f32 %v733
          %v862 = vcvt.s32.f32 %v734
          %v863 = vcvt.s32.f32 %v735
          %v864 = vcvt.s32.f32 %v736
          %v865 = vcvt.s32.f32 %v737
          %v866 = vcvt.s32.f32 %v738
          %v867 = vcvt.s32.f32 %v739
          %v868 = vcvt.s32.f32 %v740
          %v869 = vcvt.s32.f32 %v741
          %v870 = vcvt.s32.f32 %v742
          %v871 = vcvt.s32.f32 %v743
          %v872 = vcvt.s32.f32 %v744
          %v873 = vcvt.s32.f32 %v745
          %v874 = vcvt.s32.f32 %v746
          %v875 = vcvt.s32.f32 %v747
          %v876 = vcvt.s32.f32 %v748
          %v877 = vcvt.s32.f32 %v749
          %v878 = vcvt.s32.f32 %v750
          %v879 = vcvt.s32.f32 %v751
          %v880 = vcvt.s32.f32 %v752
          %v881 = vcvt.s32.f32 %v753
          %v882 = vcvt.s32.f32 %v754
          %v883 = vcvt.s32.f32 %v755
          %v884 = vcvt.s32.f32 %v756
          %v885 = vcvt.s32.f32 %v757
          %v886 = vcvt.s32.f32 %v758
          %v887 = vcvt.s32.f32 %v759
          %v888 = vcvt.s32.f32 %v760
          %v889 = vcvt.s32.f32 %v761
          %v890 = vcvt.s32.f32 %v762
          %v891 = vcvt.s32.f32 %v763
          %v892 = vcvt.s32.f32 %v764
          %v893 = vcvt.s32.f32 %v765
          %v894 = vcvt.s32.f32 %v766
          %v895 = vcvt.s32.f32 %v767
          %v896 = vcvt.s32.f32 %v768
          %v897 = vcvt.s32.f32 %v769
          %v898 = vcvt.s32.f32 %v770
          %v899 = vcvt.s32.f32 %v771
          %v900 = vcvt.s32.f32 %v772
          %v901 = vcvt.s32.f32 %v773
          %v902 = vcvt.s32.f32 %v774
          %v903 = vcvt.s32.f32 %v775
          %v904 = vcvt.s32.f32 %v776
          %v905 = vpack.c.bf16 %v781, %v777
          %v906 = vpack.c.bf16 %v782, %v778
          %v907 = vpack.c.bf16 %v783, %v779
          %v908 = vpack.c.bf16 %v784, %v780
          %v909 = vpack.c.bf16 %v789, %v785
          %v910 = vpack.c.bf16 %v790, %v786
          %v911 = vpack.c.bf16 %v791, %v787
          %v912 = vpack.c.bf16 %v792, %v788
          %v913 = vpack.c.bf16 %v797, %v793
          %v914 = vpack.c.bf16 %v798, %v794
          %v915 = vpack.c.bf16 %v799, %v795
          %v916 = vpack.c.bf16 %v800, %v796
          %v917 = vpack.c.bf16 %v805, %v801
          %v918 = vpack.c.bf16 %v806, %v802
          %v919 = vpack.c.bf16 %v807, %v803
          %v920 = vpack.c.bf16 %v808, %v804
          %v921 = vpack.c.bf16 %v813, %v809
          %v922 = vpack.c.bf16 %v814, %v810
          %v923 = vpack.c.bf16 %v815, %v811
          %v924 = vpack.c.bf16 %v816, %v812
          %v925 = vpack.c.bf16 %v821, %v817
          %v926 = vpack.c.bf16 %v822, %v818
          %v927 = vpack.c.bf16 %v823, %v819
          %v928 = vpack.c.bf16 %v824, %v820
          %v929 = vpack.c.bf16 %v829, %v825
          %v930 = vpack.c.bf16 %v830, %v826
          %v931 = vpack.c.bf16 %v831, %v827
          %v932 = vpack.c.bf16 %v832, %v828
          %v933 = vpack.c.bf16 %v837, %v833
          %v934 = vpack.c.bf16 %v838, %v834
          %v935 = vpack.c.bf16 %v839, %v835
          %v936 = vpack.c.bf16 %v840, %v836
          %v937 = vpack.c.bf16 %v845, %v841
          %v938 = vpack.c.bf16 %v846, %v842
          %v939 = vpack.c.bf16 %v847, %v843
          %v940 = vpack.c.bf16 %v848, %v844
          %v941 = vpack.c.bf16 %v853, %v849
          %v942 = vpack.c.bf16 %v854, %v850
          %v943 = vpack.c.bf16 %v855, %v851
          %v944 = vpack.c.bf16 %v856, %v852
          %v945 = vpack.c.bf16 %v861, %v857
          %v946 = vpack.c.bf16 %v862, %v858
          %v947 = vpack.c.bf16 %v863, %v859
          %v948 = vpack.c.bf16 %v864, %v860
          %v949 = vpack.c.bf16 %v869, %v865
          %v950 = vpack.c.bf16 %v870, %v866
          %v951 = vpack.c.bf16 %v871, %v867
          %v952 = vpack.c.bf16 %v872, %v868
          %v953 = vpack.c.bf16 %v877, %v873
          %v954 = vpack.c.bf16 %v878, %v874
          %v955 = vpack.c.bf16 %v879, %v875
          %v956 = vpack.c.bf16 %v880, %v876
          %v957 = vpack.c.bf16 %v885, %v881
          %v958 = vpack.c.bf16 %v886, %v882
          %v959 = vpack.c.bf16 %v887, %v883
          %v960 = vpack.c.bf16 %v888, %v884
          %v961 = vpack.c.bf16 %v893, %v889
          %v962 = vpack.c.bf16 %v894, %v890
          %v963 = vpack.c.bf16 %v895, %v891
          %v964 = vpack.c.bf16 %v896, %v892
          %v965 = vpack.c.bf16 %v901, %v897
          %v966 = vpack.c.bf16 %v902, %v898
          %v967 = vpack.c.bf16 %v903, %v899
          %v968 = vpack.c.bf16 %v904, %v900
          %v969 = vld [vmem:[%s2] sm:$0xff]
          %v970 = vld [vmem:[%s2 + $0x8] sm:$0xff]
          %v971 = vld [vmem:[%s2 + $0x10] sm:$0xff]
          %v972 = vld [vmem:[%s2 + $0x18] sm:$0xff]
          %v973 = vld [vmem:[%s2 + $0x20] sm:$0xff]
          %v974 = vld [vmem:[%s2 + $0x28] sm:$0xff]
          %v975 = vld [vmem:[%s2 + $0x30] sm:$0xff]
          %v976 = vld [vmem:[%s2 + $0x38] sm:$0xff]
          %v977 = vld [vmem:[%s2 + $0x40] sm:$0xff]
          %v978 = vld [vmem:[%s2 + $0x48] sm:$0xff]
          %v979 = vld [vmem:[%s2 + $0x50] sm:$0xff]
          %v980 = vld [vmem:[%s2 + $0x58] sm:$0xff]
          %v981 = vld [vmem:[%s2 + $0x60] sm:$0xff]
          %v982 = vld [vmem:[%s2 + $0x68] sm:$0xff]
          %v983 = vld [vmem:[%s2 + $0x70] sm:$0xff]
          %v984 = vld [vmem:[%s2 + $0x78] sm:$0xff]
          %v985 = vld [vmem:[%s2 + $0x80] sm:$0xff]
          %v986 = vld [vmem:[%s2 + $0x88] sm:$0xff]
          %v987 = vld [vmem:[%s2 + $0x90] sm:$0xff]
          %v988 = vld [vmem:[%s2 + $0x98] sm:$0xff]
          %v989 = vld [vmem:[%s2 + $0xa0] sm:$0xff]
          %v990 = vld [vmem:[%s2 + $0xa8] sm:$0xff]
          %v991 = vld [vmem:[%s2 + $0xb0] sm:$0xff]
          %v992 = vld [vmem:[%s2 + $0xb8] sm:$0xff]
          %v993 = vld [vmem:[%s2 + $0xc0] sm:$0xff]
          %v994 = vld [vmem:[%s2 + $0xc8] sm:$0xff]
          %v995 = vld [vmem:[%s2 + $0xd0] sm:$0xff]
          %v996 = vld [vmem:[%s2 + $0xd8] sm:$0xff]
          %v997 = vld [vmem:[%s2 + $0xe0] sm:$0xff]
          %v998 = vld [vmem:[%s2 + $0xe8] sm:$0xff]
          %v999 = vld [vmem:[%s2 + $0xf0] sm:$0xff]
          %v1000 = vld [vmem:[%s2 + $0xf8] sm:$0xff]
          %v1001 = vld [vmem:[%s2 + $0x100] sm:$0xff]
          %v1002 = vld [vmem:[%s2 + $0x108] sm:$0xff]
          %v1003 = vld [vmem:[%s2 + $0x110] sm:$0xff]
          %v1004 = vld [vmem:[%s2 + $0x118] sm:$0xff]
          %v1005 = vld [vmem:[%s2 + $0x120] sm:$0xff]
          %v1006 = vld [vmem:[%s2 + $0x128] sm:$0xff]
          %v1007 = vld [vmem:[%s2 + $0x130] sm:$0xff]
          %v1008 = vld [vmem:[%s2 + $0x138] sm:$0xff]
          %v1009 = vld [vmem:[%s2 + $0x140] sm:$0xff]
          %v1010 = vld [vmem:[%s2 + $0x148] sm:$0xff]
          %v1011 = vld [vmem:[%s2 + $0x150] sm:$0xff]
          %v1012 = vld [vmem:[%s2 + $0x158] sm:$0xff]
          %v1013 = vld [vmem:[%s2 + $0x160] sm:$0xff]
          %v1014 = vld [vmem:[%s2 + $0x168] sm:$0xff]
          %v1015 = vld [vmem:[%s2 + $0x170] sm:$0xff]
          %v1016 = vld [vmem:[%s2 + $0x178] sm:$0xff]
          %v1017 = vld [vmem:[%s2 + $0x180] sm:$0xff]
          %v1018 = vld [vmem:[%s2 + $0x188] sm:$0xff]
          %v1019 = vld [vmem:[%s2 + $0x190] sm:$0xff]
          %v1020 = vld [vmem:[%s2 + $0x198] sm:$0xff]
          %v1021 = vld [vmem:[%s2 + $0x1a0] sm:$0xff]
          %v1022 = vld [vmem:[%s2 + $0x1a8] sm:$0xff]
          %v1023 = vld [vmem:[%s2 + $0x1b0] sm:$0xff]
          %v1024 = vld [vmem:[%s2 + $0x1b8] sm:$0xff]
          %v1025 = vld [vmem:[%s2 + $0x1c0] sm:$0xff]
          %v1026 = vld [vmem:[%s2 + $0x1c8] sm:$0xff]
          %v1027 = vld [vmem:[%s2 + $0x1d0] sm:$0xff]
          %v1028 = vld [vmem:[%s2 + $0x1d8] sm:$0xff]
          %v1029 = vld [vmem:[%s2 + $0x1e0] sm:$0xff]
          %v1030 = vld [vmem:[%s2 + $0x1e8] sm:$0xff]
          %v1031 = vld [vmem:[%s2 + $0x1f0] sm:$0xff]
          %v1032 = vld [vmem:[%s2 + $0x1f8] sm:$0xff]
          %v1097 = vunpack.c.l.b16 %v969
          %v1098 = vunpack.c.h.b16 %v969
          %v1099 = vunpack.c.l.b16 %v970
          %v1100 = vunpack.c.h.b16 %v970
          %v1101 = vunpack.c.l.b16 %v971
          %v1102 = vunpack.c.h.b16 %v971
          %v1103 = vunpack.c.l.b16 %v972
          %v1104 = vunpack.c.h.b16 %v972
          %v1105 = vunpack.c.l.b16 %v973
          %v1106 = vunpack.c.h.b16 %v973
          %v1107 = vunpack.c.l.b16 %v974
          %v1108 = vunpack.c.h.b16 %v974
          %v1109 = vunpack.c.l.b16 %v975
          %v1110 = vunpack.c.h.b16 %v975
          %v1111 = vunpack.c.l.b16 %v976
          %v1112 = vunpack.c.h.b16 %v976
          %v1113 = vunpack.c.l.b16 %v977
          %v1114 = vunpack.c.h.b16 %v977
          %v1115 = vunpack.c.l.b16 %v978
          %v1116 = vunpack.c.h.b16 %v978
          %v1117 = vunpack.c.l.b16 %v979
          %v1118 = vunpack.c.h.b16 %v979
          %v1119 = vunpack.c.l.b16 %v980
          %v1120 = vunpack.c.h.b16 %v980
          %v1121 = vunpack.c.l.b16 %v981
          %v1122 = vunpack.c.h.b16 %v981
          %v1123 = vunpack.c.l.b16 %v982
          %v1124 = vunpack.c.h.b16 %v982
          %v1125 = vunpack.c.l.b16 %v983
          %v1126 = vunpack.c.h.b16 %v983
          %v1127 = vunpack.c.l.b16 %v984
          %v1128 = vunpack.c.h.b16 %v984
          %v1129 = vunpack.c.l.b16 %v985
          %v1130 = vunpack.c.h.b16 %v985
          %v1131 = vunpack.c.l.b16 %v986
          %v1132 = vunpack.c.h.b16 %v986
          %v1133 = vunpack.c.l.b16 %v987
          %v1134 = vunpack.c.h.b16 %v987
          %v1135 = vunpack.c.l.b16 %v988
          %v1136 = vunpack.c.h.b16 %v988
          %v1137 = vunpack.c.l.b16 %v989
          %v1138 = vunpack.c.h.b16 %v989
          %v1139 = vunpack.c.l.b16 %v990
          %v1140 = vunpack.c.h.b16 %v990
          %v1141 = vunpack.c.l.b16 %v991
          %v1142 = vunpack.c.h.b16 %v991
          %v1143 = vunpack.c.l.b16 %v992
          %v1144 = vunpack.c.h.b16 %v992
          %v1145 = vunpack.c.l.b16 %v993
          %v1146 = vunpack.c.h.b16 %v993
          %v1147 = vunpack.c.l.b16 %v994
          %v1148 = vunpack.c.h.b16 %v994
          %v1149 = vunpack.c.l.b16 %v995
          %v1150 = vunpack.c.h.b16 %v995
          %v1151 = vunpack.c.l.b16 %v996
          %v1152 = vunpack.c.h.b16 %v996
          %v1153 = vunpack.c.l.b16 %v997
          %v1154 = vunpack.c.h.b16 %v997
          %v1155 = vunpack.c.l.b16 %v998
          %v1156 = vunpack.c.h.b16 %v998
          %v1157 = vunpack.c.l.b16 %v999
          %v1158 = vunpack.c.h.b16 %v999
          %v1159 = vunpack.c.l.b16 %v1000
          %v1160 = vunpack.c.h.b16 %v1000
          %v1161 = vunpack.c.l.b16 %v1001
          %v1162 = vunpack.c.h.b16 %v1001
          %v1163 = vunpack.c.l.b16 %v1002
          %v1164 = vunpack.c.h.b16 %v1002
          %v1165 = vunpack.c.l.b16 %v1003
          %v1166 = vunpack.c.h.b16 %v1003
          %v1167 = vunpack.c.l.b16 %v1004
          %v1168 = vunpack.c.h.b16 %v1004
          %v1169 = vunpack.c.l.b16 %v1005
          %v1170 = vunpack.c.h.b16 %v1005
          %v1171 = vunpack.c.l.b16 %v1006
          %v1172 = vunpack.c.h.b16 %v1006
          %v1173 = vunpack.c.l.b16 %v1007
          %v1174 = vunpack.c.h.b16 %v1007
          %v1175 = vunpack.c.l.b16 %v1008
          %v1176 = vunpack.c.h.b16 %v1008
          %v1177 = vunpack.c.l.b16 %v1009
          %v1178 = vunpack.c.h.b16 %v1009
          %v1179 = vunpack.c.l.b16 %v1010
          %v1180 = vunpack.c.h.b16 %v1010
          %v1181 = vunpack.c.l.b16 %v1011
          %v1182 = vunpack.c.h.b16 %v1011
          %v1183 = vunpack.c.l.b16 %v1012
          %v1184 = vunpack.c.h.b16 %v1012
          %v1185 = vunpack.c.l.b16 %v1013
          %v1186 = vunpack.c.h.b16 %v1013
          %v1187 = vunpack.c.l.b16 %v1014
          %v1188 = vunpack.c.h.b16 %v1014
          %v1189 = vunpack.c.l.b16 %v1015
          %v1190 = vunpack.c.h.b16 %v1015
          %v1191 = vunpack.c.l.b16 %v1016
          %v1192 = vunpack.c.h.b16 %v1016
          %v1193 = vunpack.c.l.b16 %v1017
          %v1194 = vunpack.c.h.b16 %v1017
          %v1195 = vunpack.c.l.b16 %v1018
          %v1196 = vunpack.c.h.b16 %v1018
          %v1197 = vunpack.c.l.b16 %v1019
          %v1198 = vunpack.c.h.b16 %v1019
          %v1199 = vunpack.c.l.b16 %v1020
          %v1200 = vunpack.c.h.b16 %v1020
          %v1201 = vunpack.c.l.b16 %v1021
          %v1202 = vunpack.c.h.b16 %v1021
          %v1203 = vunpack.c.l.b16 %v1022
          %v1204 = vunpack.c.h.b16 %v1022
          %v1205 = vunpack.c.l.b16 %v1023
          %v1206 = vunpack.c.h.b16 %v1023
          %v1207 = vunpack.c.l.b16 %v1024
          %v1208 = vunpack.c.h.b16 %v1024
          %v1209 = vunpack.c.l.b16 %v1025
          %v1210 = vunpack.c.h.b16 %v1025
          %v1211 = vunpack.c.l.b16 %v1026
          %v1212 = vunpack.c.h.b16 %v1026
          %v1213 = vunpack.c.l.b16 %v1027
          %v1214 = vunpack.c.h.b16 %v1027
          %v1215 = vunpack.c.l.b16 %v1028
          %v1216 = vunpack.c.h.b16 %v1028
          %v1217 = vunpack.c.l.b16 %v1029
          %v1218 = vunpack.c.h.b16 %v1029
          %v1219 = vunpack.c.l.b16 %v1030
          %v1220 = vunpack.c.h.b16 %v1030
          %v1221 = vunpack.c.l.b16 %v1031
          %v1222 = vunpack.c.h.b16 %v1031
          %v1223 = vunpack.c.l.b16 %v1032
          %v1224 = vunpack.c.h.b16 %v1032
          %v1225 = vpack.c.b16 %v1099, %v1097
          %v1226 = vpack.c.b16 %v1100, %v1098
          %v1227 = vpack.c.b16 %v1103, %v1101
          %v1228 = vpack.c.b16 %v1104, %v1102
          %v1229 = vpack.c.b16 %v1107, %v1105
          %v1230 = vpack.c.b16 %v1108, %v1106
          %v1231 = vpack.c.b16 %v1111, %v1109
          %v1232 = vpack.c.b16 %v1112, %v1110
          %v1233 = vpack.c.b16 %v1115, %v1113
          %v1234 = vpack.c.b16 %v1116, %v1114
          %v1235 = vpack.c.b16 %v1119, %v1117
          %v1236 = vpack.c.b16 %v1120, %v1118
          %v1237 = vpack.c.b16 %v1123, %v1121
          %v1238 = vpack.c.b16 %v1124, %v1122
          %v1239 = vpack.c.b16 %v1127, %v1125
          %v1240 = vpack.c.b16 %v1128, %v1126
          %v1241 = vpack.c.b16 %v1131, %v1129
          %v1242 = vpack.c.b16 %v1132, %v1130
          %v1243 = vpack.c.b16 %v1135, %v1133
          %v1244 = vpack.c.b16 %v1136, %v1134
          %v1245 = vpack.c.b16 %v1139, %v1137
          %v1246 = vpack.c.b16 %v1140, %v1138
          %v1247 = vpack.c.b16 %v1143, %v1141
          %v1248 = vpack.c.b16 %v1144, %v1142
          %v1249 = vpack.c.b16 %v1147, %v1145
          %v1250 = vpack.c.b16 %v1148, %v1146
          %v1251 = vpack.c.b16 %v1151, %v1149
          %v1252 = vpack.c.b16 %v1152, %v1150
          %v1253 = vpack.c.b16 %v1155, %v1153
          %v1254 = vpack.c.b16 %v1156, %v1154
          %v1255 = vpack.c.b16 %v1159, %v1157
          %v1256 = vpack.c.b16 %v1160, %v1158
          %v1257 = vpack.c.b16 %v1163, %v1161
          %v1258 = vpack.c.b16 %v1164, %v1162
          %v1259 = vpack.c.b16 %v1167, %v1165
          %v1260 = vpack.c.b16 %v1168, %v1166
          %v1261 = vpack.c.b16 %v1171, %v1169
          %v1262 = vpack.c.b16 %v1172, %v1170
          %v1263 = vpack.c.b16 %v1175, %v1173
          %v1264 = vpack.c.b16 %v1176, %v1174
          %v1265 = vpack.c.b16 %v1179, %v1177
          %v1266 = vpack.c.b16 %v1180, %v1178
          %v1267 = vpack.c.b16 %v1183, %v1181
          %v1268 = vpack.c.b16 %v1184, %v1182
          %v1269 = vpack.c.b16 %v1187, %v1185
          %v1270 = vpack.c.b16 %v1188, %v1186
          %v1271 = vpack.c.b16 %v1191, %v1189
          %v1272 = vpack.c.b16 %v1192, %v1190
          %v1273 = vpack.c.b16 %v1195, %v1193
          %v1274 = vpack.c.b16 %v1196, %v1194
          %v1275 = vpack.c.b16 %v1199, %v1197
          %v1276 = vpack.c.b16 %v1200, %v1198
          %v1277 = vpack.c.b16 %v1203, %v1201
          %v1278 = vpack.c.b16 %v1204, %v1202
          %v1279 = vpack.c.b16 %v1207, %v1205
          %v1280 = vpack.c.b16 %v1208, %v1206
          %v1281 = vpack.c.b16 %v1211, %v1209
          %v1282 = vpack.c.b16 %v1212, %v1210
          %v1283 = vpack.c.b16 %v1215, %v1213
          %v1284 = vpack.c.b16 %v1216, %v1214
          %v1285 = vpack.c.b16 %v1219, %v1217
          %v1286 = vpack.c.b16 %v1220, %v1218
          %v1287 = vpack.c.b16 %v1223, %v1221
          %v1288 = vpack.c.b16 %v1224, %v1222
          %1353 = vmatprep.subr.bf16.mxu0 %v1240
          %1354 = vmatpush1.bf16.msra.mxu0 %v1239
          %1355 = vmatprep.subr.bf16.mxu0 %v1238
          %1356 = vmatpush1.bf16.msra.mxu0 %v1237
          %1357 = vmatprep.subr.bf16.mxu0 %v1236
          %1358 = vmatpush1.bf16.msra.mxu0 %v1235
          %1359 = vmatprep.subr.bf16.mxu0 %v1234
          %1360 = vmatpush1.bf16.msra.mxu0 %v1233
          %1361 = vmatprep.subr.bf16.mxu0 %v1232
          %1362 = vmatpush1.bf16.msra.mxu0 %v1231
          %1363 = vmatprep.subr.bf16.mxu0 %v1230
          %1364 = vmatpush1.bf16.msra.mxu0 %v1229
          %1365 = vmatprep.subr.bf16.mxu0 %v1228
          %1366 = vmatpush1.bf16.msra.mxu0 %v1227
          %1367 = vmatprep.subr.bf16.mxu0 %v1226
          %1368 = vmatpush1.bf16.msra.mxu0 %v1225
          %1369 = vmatprep.subr.bf16.mxu0 %v1256
          %1370 = vmatpush2.bf16.msra.mxu0 %v1255
          %1371 = vmatprep.subr.bf16.mxu0 %v1254
          %1372 = vmatpush2.bf16.msra.mxu0 %v1253
          %1373 = vmatprep.subr.bf16.mxu0 %v1252
          %1374 = vmatpush2.bf16.msra.mxu0 %v1251
          %1375 = vmatprep.subr.bf16.mxu0 %v1250
          %1376 = vmatpush2.bf16.msra.mxu0 %v1249
          %1377 = vmatprep.subr.bf16.mxu0 %v1248
          %1378 = vmatpush2.bf16.msra.mxu0 %v1247
          %1379 = vmatprep.subr.bf16.mxu0 %v1246
          %1380 = vmatpush2.bf16.msra.mxu0 %v1245
          %1381 = vmatprep.subr.bf16.mxu0 %v1244
          %1382 = vmatpush2.bf16.msra.mxu0 %v1243
          %1383 = vmatprep.subr.bf16.mxu0 %v1242
          %1384 = vmatpush2.bf16.msra.mxu0 %v1241
          %1385 = vmatprep.mubr.bf16.mxu0 %v906
          %1386 = vmatmul.mubr.bf16.gmra.mxu0 %v905
          %v1387 = vpop.f32.mrf.mxu0
          %v1388 = vadd.f32 0.0, %v1387
          %v1389 = vpop.f32.mrf.mxu0
          %v1390 = vadd.f32 0.0, %v1389
          %v1391 = vpop.f32.mrf.mxu0
          %v1392 = vadd.f32 0.0, %v1391
          %v1393 = vpop.f32.mrf.mxu0
          %v1394 = vadd.f32 0.0, %v1393
          %1395 = vmatprep.mubr.bf16.mxu0 %v910
          %1396 = vmatmul.mubr.bf16.gmra.mxu0 %v909
          %v1397 = vpop.f32.mrf.mxu0
          %v1398 = vadd.f32 0.0, %v1397
          %v1399 = vpop.f32.mrf.mxu0
          %v1400 = vadd.f32 0.0, %v1399
          %v1401 = vpop.f32.mrf.mxu0
          %v1402 = vadd.f32 0.0, %v1401
          %v1403 = vpop.f32.mrf.mxu0
          %v1404 = vadd.f32 0.0, %v1403
          %1405 = vmatprep.mubr.bf16.mxu0 %v914
          %1406 = vmatmul.mubr.bf16.gmra.mxu0 %v913
          %v1407 = vpop.f32.mrf.mxu0
          %v1408 = vadd.f32 0.0, %v1407
          %v1409 = vpop.f32.mrf.mxu0
          %v1410 = vadd.f32 0.0, %v1409
          %v1411 = vpop.f32.mrf.mxu0
          %v1412 = vadd.f32 0.0, %v1411
          %v1413 = vpop.f32.mrf.mxu0
          %v1414 = vadd.f32 0.0, %v1413
          %1415 = vmatprep.mubr.bf16.mxu0 %v918
          %1416 = vmatmul.mubr.bf16.gmra.mxu0 %v917
          %v1417 = vpop.f32.mrf.mxu0
          %v1418 = vadd.f32 0.0, %v1417
          %v1419 = vpop.f32.mrf.mxu0
          %v1420 = vadd.f32 0.0, %v1419
          %v1421 = vpop.f32.mrf.mxu0
          %v1422 = vadd.f32 0.0, %v1421
          %v1423 = vpop.f32.mrf.mxu0
          %v1424 = vadd.f32 0.0, %v1423
          %1425 = vmatprep.mubr.bf16.mxu0 %v922
          %1426 = vmatmul.mubr.bf16.gmra.mxu0 %v921
          %v1427 = vpop.f32.mrf.mxu0
          %v1428 = vadd.f32 0.0, %v1427
          %v1429 = vpop.f32.mrf.mxu0
          %v1430 = vadd.f32 0.0, %v1429
          %v1431 = vpop.f32.mrf.mxu0
          %v1432 = vadd.f32 0.0, %v1431
          %v1433 = vpop.f32.mrf.mxu0
          %v1434 = vadd.f32 0.0, %v1433
          %1435 = vmatprep.mubr.bf16.mxu0 %v926
          %1436 = vmatmul.mubr.bf16.gmra.mxu0 %v925
          %v1437 = vpop.f32.mrf.mxu0
          %v1438 = vadd.f32 0.0, %v1437
          %v1439 = vpop.f32.mrf.mxu0
          %v1440 = vadd.f32 0.0, %v1439
          %v1441 = vpop.f32.mrf.mxu0
          %v1442 = vadd.f32 0.0, %v1441
          %v1443 = vpop.f32.mrf.mxu0
          %v1444 = vadd.f32 0.0, %v1443
          %1445 = vmatprep.mubr.bf16.mxu0 %v930
          %1446 = vmatmul.mubr.bf16.gmra.mxu0 %v929
          %v1447 = vpop.f32.mrf.mxu0
          %v1448 = vadd.f32 0.0, %v1447
          %v1449 = vpop.f32.mrf.mxu0
          %v1450 = vadd.f32 0.0, %v1449
          %v1451 = vpop.f32.mrf.mxu0
          %v1452 = vadd.f32 0.0, %v1451
          %v1453 = vpop.f32.mrf.mxu0
          %v1454 = vadd.f32 0.0, %v1453
          %1455 = vmatprep.mubr.bf16.mxu0 %v934
          %1456 = vmatmul.mubr.bf16.gmra.mxu0 %v933
          %v1457 = vpop.f32.mrf.mxu0
          %v1458 = vadd.f32 0.0, %v1457
          %v1459 = vpop.f32.mrf.mxu0
          %v1460 = vadd.f32 0.0, %v1459
          %v1461 = vpop.f32.mrf.mxu0
          %v1462 = vadd.f32 0.0, %v1461
          %v1463 = vpop.f32.mrf.mxu0
          %v1464 = vadd.f32 0.0, %v1463
          %1465 = vmatprep.mubr.bf16.mxu0 %v938
          %1466 = vmatmul.mubr.bf16.gmra.mxu0 %v937
          %v1467 = vpop.f32.mrf.mxu0
          %v1468 = vadd.f32 0.0, %v1467
          %v1469 = vpop.f32.mrf.mxu0
          %v1470 = vadd.f32 0.0, %v1469
          %v1471 = vpop.f32.mrf.mxu0
          %v1472 = vadd.f32 0.0, %v1471
          %v1473 = vpop.f32.mrf.mxu0
          %v1474 = vadd.f32 0.0, %v1473
          %1475 = vmatprep.mubr.bf16.mxu0 %v942
          %1476 = vmatmul.mubr.bf16.gmra.mxu0 %v941
          %v1477 = vpop.f32.mrf.mxu0
          %v1478 = vadd.f32 0.0, %v1477
          %v1479 = vpop.f32.mrf.mxu0
          %v1480 = vadd.f32 0.0, %v1479
          %v1481 = vpop.f32.mrf.mxu0
          %v1482 = vadd.f32 0.0, %v1481
          %v1483 = vpop.f32.mrf.mxu0
          %v1484 = vadd.f32 0.0, %v1483
          %1485 = vmatprep.mubr.bf16.mxu0 %v946
          %1486 = vmatmul.mubr.bf16.gmra.mxu0 %v945
          %v1487 = vpop.f32.mrf.mxu0
          %v1488 = vadd.f32 0.0, %v1487
          %v1489 = vpop.f32.mrf.mxu0
          %v1490 = vadd.f32 0.0, %v1489
          %v1491 = vpop.f32.mrf.mxu0
          %v1492 = vadd.f32 0.0, %v1491
          %v1493 = vpop.f32.mrf.mxu0
          %v1494 = vadd.f32 0.0, %v1493
          %1495 = vmatprep.mubr.bf16.mxu0 %v950
          %1496 = vmatmul.mubr.bf16.gmra.mxu0 %v949
          %v1497 = vpop.f32.mrf.mxu0
          %v1498 = vadd.f32 0.0, %v1497
          %v1499 = vpop.f32.mrf.mxu0
          %v1500 = vadd.f32 0.0, %v1499
          %v1501 = vpop.f32.mrf.mxu0
          %v1502 = vadd.f32 0.0, %v1501
          %v1503 = vpop.f32.mrf.mxu0
          %v1504 = vadd.f32 0.0, %v1503
          %1505 = vmatprep.mubr.bf16.mxu0 %v954
          %1506 = vmatmul.mubr.bf16.gmra.mxu0 %v953
          %v1507 = vpop.f32.mrf.mxu0
          %v1508 = vadd.f32 0.0, %v1507
          %v1509 = vpop.f32.mrf.mxu0
          %v1510 = vadd.f32 0.0, %v1509
          %v1511 = vpop.f32.mrf.mxu0
          %v1512 = vadd.f32 0.0, %v1511
          %v1513 = vpop.f32.mrf.mxu0
          %v1514 = vadd.f32 0.0, %v1513
          %1515 = vmatprep.mubr.bf16.mxu0 %v958
          %1516 = vmatmul.mubr.bf16.gmra.mxu0 %v957
          %v1517 = vpop.f32.mrf.mxu0
          %v1518 = vadd.f32 0.0, %v1517
          %v1519 = vpop.f32.mrf.mxu0
          %v1520 = vadd.f32 0.0, %v1519
          %v1521 = vpop.f32.mrf.mxu0
          %v1522 = vadd.f32 0.0, %v1521
          %v1523 = vpop.f32.mrf.mxu0
          %v1524 = vadd.f32 0.0, %v1523
          %1525 = vmatprep.mubr.bf16.mxu0 %v962
          %1526 = vmatmul.mubr.bf16.gmra.mxu0 %v961
          %v1527 = vpop.f32.mrf.mxu0
          %v1528 = vadd.f32 0.0, %v1527
          %v1529 = vpop.f32.mrf.mxu0
          %v1530 = vadd.f32 0.0, %v1529
          %v1531 = vpop.f32.mrf.mxu0
          %v1532 = vadd.f32 0.0, %v1531
          %v1533 = vpop.f32.mrf.mxu0
          %v1534 = vadd.f32 0.0, %v1533
          %1535 = vmatprep.mubr.bf16.mxu0 %v966
          %1536 = vmatmul.mubr.bf16.gmra.mxu0 %v965
          %v1537 = vpop.f32.mrf.mxu0
          %v1538 = vadd.f32 0.0, %v1537
          %v1539 = vpop.f32.mrf.mxu0
          %v1540 = vadd.f32 0.0, %v1539
          %v1541 = vpop.f32.mrf.mxu0
          %v1542 = vadd.f32 0.0, %v1541
          %v1543 = vpop.f32.mrf.mxu0
          %v1544 = vadd.f32 0.0, %v1543
          %1545 = vdwg.mxu0
          %1546 = vmatprep.subr.bf16.mxu0 %v1272
          %1547 = vmatpush1.bf16.msra.mxu0 %v1271
          %1548 = vmatprep.subr.bf16.mxu0 %v1270
          %1549 = vmatpush1.bf16.msra.mxu0 %v1269
          %1550 = vmatprep.subr.bf16.mxu0 %v1268
          %1551 = vmatpush1.bf16.msra.mxu0 %v1267
          %1552 = vmatprep.subr.bf16.mxu0 %v1266
          %1553 = vmatpush1.bf16.msra.mxu0 %v1265
          %1554 = vmatprep.subr.bf16.mxu0 %v1264
          %1555 = vmatpush1.bf16.msra.mxu0 %v1263
          %1556 = vmatprep.subr.bf16.mxu0 %v1262
          %1557 = vmatpush1.bf16.msra.mxu0 %v1261
          %1558 = vmatprep.subr.bf16.mxu0 %v1260
          %1559 = vmatpush1.bf16.msra.mxu0 %v1259
          %1560 = vmatprep.subr.bf16.mxu0 %v1258
          %1561 = vmatpush1.bf16.msra.mxu0 %v1257
          %1562 = vmatprep.subr.bf16.mxu0 %v1288
          %1563 = vmatpush2.bf16.msra.mxu0 %v1287
          %1564 = vmatprep.subr.bf16.mxu0 %v1286
          %1565 = vmatpush2.bf16.msra.mxu0 %v1285
          %1566 = vmatprep.subr.bf16.mxu0 %v1284
          %1567 = vmatpush2.bf16.msra.mxu0 %v1283
          %1568 = vmatprep.subr.bf16.mxu0 %v1282
          %1569 = vmatpush2.bf16.msra.mxu0 %v1281
          %1570 = vmatprep.subr.bf16.mxu0 %v1280
          %1571 = vmatpush2.bf16.msra.mxu0 %v1279
          %1572 = vmatprep.subr.bf16.mxu0 %v1278
          %1573 = vmatpush2.bf16.msra.mxu0 %v1277
          %1574 = vmatprep.subr.bf16.mxu0 %v1276
          %1575 = vmatpush2.bf16.msra.mxu0 %v1275
          %1576 = vmatprep.subr.bf16.mxu0 %v1274
          %1577 = vmatpush2.bf16.msra.mxu0 %v1273
          %1578 = vmatprep.mubr.bf16.mxu0 %v908
          %1579 = vmatmul.mubr.bf16.gmra.mxu0 %v907
          %v1580 = vpop.f32.mrf.mxu0
          %v1581 = vadd.f32 %v1388, %v1580
          %v1582 = vpop.f32.mrf.mxu0
          %v1583 = vadd.f32 %v1390, %v1582
          %v1584 = vpop.f32.mrf.mxu0
          %v1585 = vadd.f32 %v1392, %v1584
          %v1586 = vpop.f32.mrf.mxu0
          %v1587 = vadd.f32 %v1394, %v1586
          %1588 = vmatprep.mubr.bf16.mxu0 %v912
          %1589 = vmatmul.mubr.bf16.gmra.mxu0 %v911
          %v1590 = vpop.f32.mrf.mxu0
          %v1591 = vadd.f32 %v1398, %v1590
          %v1592 = vpop.f32.mrf.mxu0
          %v1593 = vadd.f32 %v1400, %v1592
          %v1594 = vpop.f32.mrf.mxu0
          %v1595 = vadd.f32 %v1402, %v1594
          %v1596 = vpop.f32.mrf.mxu0
          %v1597 = vadd.f32 %v1404, %v1596
          %1598 = vmatprep.mubr.bf16.mxu0 %v916
          %1599 = vmatmul.mubr.bf16.gmra.mxu0 %v915
          %v1600 = vpop.f32.mrf.mxu0
          %v1601 = vadd.f32 %v1408, %v1600
          %v1602 = vpop.f32.mrf.mxu0
          %v1603 = vadd.f32 %v1410, %v1602
          %v1604 = vpop.f32.mrf.mxu0
          %v1605 = vadd.f32 %v1412, %v1604
          %v1606 = vpop.f32.mrf.mxu0
          %v1607 = vadd.f32 %v1414, %v1606
          %1608 = vmatprep.mubr.bf16.mxu0 %v920
          %1609 = vmatmul.mubr.bf16.gmra.mxu0 %v919
          %v1610 = vpop.f32.mrf.mxu0
          %v1611 = vadd.f32 %v1418, %v1610
          %v1612 = vpop.f32.mrf.mxu0
          %v1613 = vadd.f32 %v1420, %v1612
          %v1614 = vpop.f32.mrf.mxu0
          %v1615 = vadd.f32 %v1422, %v1614
          %v1616 = vpop.f32.mrf.mxu0
          %v1617 = vadd.f32 %v1424, %v1616
          %1618 = vmatprep.mubr.bf16.mxu0 %v924
          %1619 = vmatmul.mubr.bf16.gmra.mxu0 %v923
          %v1620 = vpop.f32.mrf.mxu0
          %v1621 = vadd.f32 %v1428, %v1620
          %v1622 = vpop.f32.mrf.mxu0
          %v1623 = vadd.f32 %v1430, %v1622
          %v1624 = vpop.f32.mrf.mxu0
          %v1625 = vadd.f32 %v1432, %v1624
          %v1626 = vpop.f32.mrf.mxu0
          %v1627 = vadd.f32 %v1434, %v1626
          %1628 = vmatprep.mubr.bf16.mxu0 %v928
          %1629 = vmatmul.mubr.bf16.gmra.mxu0 %v927
          %v1630 = vpop.f32.mrf.mxu0
          %v1631 = vadd.f32 %v1438, %v1630
          %v1632 = vpop.f32.mrf.mxu0
          %v1633 = vadd.f32 %v1440, %v1632
          %v1634 = vpop.f32.mrf.mxu0
          %v1635 = vadd.f32 %v1442, %v1634
          %v1636 = vpop.f32.mrf.mxu0
          %v1637 = vadd.f32 %v1444, %v1636
          %1638 = vmatprep.mubr.bf16.mxu0 %v932
          %1639 = vmatmul.mubr.bf16.gmra.mxu0 %v931
          %v1640 = vpop.f32.mrf.mxu0
          %v1641 = vadd.f32 %v1448, %v1640
          %v1642 = vpop.f32.mrf.mxu0
          %v1643 = vadd.f32 %v1450, %v1642
          %v1644 = vpop.f32.mrf.mxu0
          %v1645 = vadd.f32 %v1452, %v1644
          %v1646 = vpop.f32.mrf.mxu0
          %v1647 = vadd.f32 %v1454, %v1646
          %1648 = vmatprep.mubr.bf16.mxu0 %v936
          %1649 = vmatmul.mubr.bf16.gmra.mxu0 %v935
          %v1650 = vpop.f32.mrf.mxu0
          %v1651 = vadd.f32 %v1458, %v1650
          %v1652 = vpop.f32.mrf.mxu0
          %v1653 = vadd.f32 %v1460, %v1652
          %v1654 = vpop.f32.mrf.mxu0
          %v1655 = vadd.f32 %v1462, %v1654
          %v1656 = vpop.f32.mrf.mxu0
          %v1657 = vadd.f32 %v1464, %v1656
          %1658 = vmatprep.mubr.bf16.mxu0 %v940
          %1659 = vmatmul.mubr.bf16.gmra.mxu0 %v939
          %v1660 = vpop.f32.mrf.mxu0
          %v1661 = vadd.f32 %v1468, %v1660
          %v1662 = vpop.f32.mrf.mxu0
          %v1663 = vadd.f32 %v1470, %v1662
          %v1664 = vpop.f32.mrf.mxu0
          %v1665 = vadd.f32 %v1472, %v1664
          %v1666 = vpop.f32.mrf.mxu0
          %v1667 = vadd.f32 %v1474, %v1666
          %1668 = vmatprep.mubr.bf16.mxu0 %v944
          %1669 = vmatmul.mubr.bf16.gmra.mxu0 %v943
          %v1670 = vpop.f32.mrf.mxu0
          %v1671 = vadd.f32 %v1478, %v1670
          %v1672 = vpop.f32.mrf.mxu0
          %v1673 = vadd.f32 %v1480, %v1672
          %v1674 = vpop.f32.mrf.mxu0
          %v1675 = vadd.f32 %v1482, %v1674
          %v1676 = vpop.f32.mrf.mxu0
          %v1677 = vadd.f32 %v1484, %v1676
          %1678 = vmatprep.mubr.bf16.mxu0 %v948
          %1679 = vmatmul.mubr.bf16.gmra.mxu0 %v947
          %v1680 = vpop.f32.mrf.mxu0
          %v1681 = vadd.f32 %v1488, %v1680
          %v1682 = vpop.f32.mrf.mxu0
          %v1683 = vadd.f32 %v1490, %v1682
          %v1684 = vpop.f32.mrf.mxu0
          %v1685 = vadd.f32 %v1492, %v1684
          %v1686 = vpop.f32.mrf.mxu0
          %v1687 = vadd.f32 %v1494, %v1686
          %1688 = vmatprep.mubr.bf16.mxu0 %v952
          %1689 = vmatmul.mubr.bf16.gmra.mxu0 %v951
          %v1690 = vpop.f32.mrf.mxu0
          %v1691 = vadd.f32 %v1498, %v1690
          %v1692 = vpop.f32.mrf.mxu0
          %v1693 = vadd.f32 %v1500, %v1692
          %v1694 = vpop.f32.mrf.mxu0
          %v1695 = vadd.f32 %v1502, %v1694
          %v1696 = vpop.f32.mrf.mxu0
          %v1697 = vadd.f32 %v1504, %v1696
          %1698 = vmatprep.mubr.bf16.mxu0 %v956
          %1699 = vmatmul.mubr.bf16.gmra.mxu0 %v955
          %v1700 = vpop.f32.mrf.mxu0
          %v1701 = vadd.f32 %v1508, %v1700
          %v1702 = vpop.f32.mrf.mxu0
          %v1703 = vadd.f32 %v1510, %v1702
          %v1704 = vpop.f32.mrf.mxu0
          %v1705 = vadd.f32 %v1512, %v1704
          %v1706 = vpop.f32.mrf.mxu0
          %v1707 = vadd.f32 %v1514, %v1706
          %1708 = vmatprep.mubr.bf16.mxu0 %v960
          %1709 = vmatmul.mubr.bf16.gmra.mxu0 %v959
          %v1710 = vpop.f32.mrf.mxu0
          %v1711 = vadd.f32 %v1518, %v1710
          %v1712 = vpop.f32.mrf.mxu0
          %v1713 = vadd.f32 %v1520, %v1712
          %v1714 = vpop.f32.mrf.mxu0
          %v1715 = vadd.f32 %v1522, %v1714
          %v1716 = vpop.f32.mrf.mxu0
          %v1717 = vadd.f32 %v1524, %v1716
          %1718 = vmatprep.mubr.bf16.mxu0 %v964
          %1719 = vmatmul.mubr.bf16.gmra.mxu0 %v963
          %v1720 = vpop.f32.mrf.mxu0
          %v1721 = vadd.f32 %v1528, %v1720
          %v1722 = vpop.f32.mrf.mxu0
          %v1723 = vadd.f32 %v1530, %v1722
          %v1724 = vpop.f32.mrf.mxu0
          %v1725 = vadd.f32 %v1532, %v1724
          %v1726 = vpop.f32.mrf.mxu0
          %v1727 = vadd.f32 %v1534, %v1726
          %1728 = vmatprep.mubr.bf16.mxu0 %v968
          %1729 = vmatmul.mubr.bf16.gmra.mxu0 %v967
          %v1730 = vpop.f32.mrf.mxu0
          %v1731 = vadd.f32 %v1538, %v1730
          %v1732 = vpop.f32.mrf.mxu0
          %v1733 = vadd.f32 %v1540, %v1732
          %v1734 = vpop.f32.mrf.mxu0
          %v1735 = vadd.f32 %v1542, %v1734
          %v1736 = vpop.f32.mrf.mxu0
          %v1737 = vadd.f32 %v1544, %v1736
          %1738 = vdwg.mxu0
          %v1739 = vpack.c.bf16 %v1585, %v1581
          %v1740 = vpack.c.bf16 %v1587, %v1583
          %v1741 = vpack.c.bf16 %v1595, %v1591
          %v1742 = vpack.c.bf16 %v1597, %v1593
          %v1743 = vpack.c.bf16 %v1605, %v1601
          %v1744 = vpack.c.bf16 %v1607, %v1603
          %v1745 = vpack.c.bf16 %v1615, %v1611
          %v1746 = vpack.c.bf16 %v1617, %v1613
          %v1747 = vpack.c.bf16 %v1625, %v1621
          %v1748 = vpack.c.bf16 %v1627, %v1623
          %v1749 = vpack.c.bf16 %v1635, %v1631
          %v1750 = vpack.c.bf16 %v1637, %v1633
          %v1751 = vpack.c.bf16 %v1645, %v1641
          %v1752 = vpack.c.bf16 %v1647, %v1643
          %v1753 = vpack.c.bf16 %v1655, %v1651
          %v1754 = vpack.c.bf16 %v1657, %v1653
          %v1755 = vpack.c.bf16 %v1665, %v1661
          %v1756 = vpack.c.bf16 %v1667, %v1663
          %v1757 = vpack.c.bf16 %v1675, %v1671
          %v1758 = vpack.c.bf16 %v1677, %v1673
          %v1759 = vpack.c.bf16 %v1685, %v1681
          %v1760 = vpack.c.bf16 %v1687, %v1683
          %v1761 = vpack.c.bf16 %v1695, %v1691
          %v1762 = vpack.c.bf16 %v1697, %v1693
          %v1763 = vpack.c.bf16 %v1705, %v1701
          %v1764 = vpack.c.bf16 %v1707, %v1703
          %v1765 = vpack.c.bf16 %v1715, %v1711
          %v1766 = vpack.c.bf16 %v1717, %v1713
          %v1767 = vpack.c.bf16 %v1725, %v1721
          %v1768 = vpack.c.bf16 %v1727, %v1723
          %v1769 = vpack.c.bf16 %v1735, %v1731
          %v1770 = vpack.c.bf16 %v1737, %v1733
          %v1771 = vld [vmem:[#allocation4] sm:$0xff]
          %v1772 = vld [vmem:[#allocation4 + $0x8] sm:$0xff]
          %v1773 = vld [vmem:[#allocation4 + $0x10] sm:$0xff]
          %v1774 = vld [vmem:[#allocation4 + $0x18] sm:$0xff]
          %v1775 = vld [vmem:[#allocation4 + $0x20] sm:$0xff]
          %v1776 = vld [vmem:[#allocation4 + $0x28] sm:$0xff]
          %v1777 = vld [vmem:[#allocation4 + $0x30] sm:$0xff]
          %v1778 = vld [vmem:[#allocation4 + $0x38] sm:$0xff]
          %v1779 = vld [vmem:[#allocation4 + $0x40] sm:$0xff]
          %v1780 = vld [vmem:[#allocation4 + $0x48] sm:$0xff]
          %v1781 = vld [vmem:[#allocation4 + $0x50] sm:$0xff]
          %v1782 = vld [vmem:[#allocation4 + $0x58] sm:$0xff]
          %v1783 = vld [vmem:[#allocation4 + $0x60] sm:$0xff]
          %v1784 = vld [vmem:[#allocation4 + $0x68] sm:$0xff]
          %v1785 = vld [vmem:[#allocation4 + $0x70] sm:$0xff]
          %v1786 = vld [vmem:[#allocation4 + $0x78] sm:$0xff]
          %v1787 = vld [vmem:[#allocation4 + $0x80] sm:$0xff]
          %v1788 = vld [vmem:[#allocation4 + $0x88] sm:$0xff]
          %v1789 = vld [vmem:[#allocation4 + $0x90] sm:$0xff]
          %v1790 = vld [vmem:[#allocation4 + $0x98] sm:$0xff]
          %v1791 = vld [vmem:[#allocation4 + $0xa0] sm:$0xff]
          %v1792 = vld [vmem:[#allocation4 + $0xa8] sm:$0xff]
          %v1793 = vld [vmem:[#allocation4 + $0xb0] sm:$0xff]
          %v1794 = vld [vmem:[#allocation4 + $0xb8] sm:$0xff]
          %v1795 = vld [vmem:[#allocation4 + $0xc0] sm:$0xff]
          %v1796 = vld [vmem:[#allocation4 + $0xc8] sm:$0xff]
          %v1797 = vld [vmem:[#allocation4 + $0xd0] sm:$0xff]
          %v1798 = vld [vmem:[#allocation4 + $0xd8] sm:$0xff]
          %v1799 = vld [vmem:[#allocation4 + $0xe0] sm:$0xff]
          %v1800 = vld [vmem:[#allocation4 + $0xe8] sm:$0xff]
          %v1801 = vld [vmem:[#allocation4 + $0xf0] sm:$0xff]
          %v1802 = vld [vmem:[#allocation4 + $0xf8] sm:$0xff]
          %v1803 = vld [vmem:[%s4] sm:$0x3]
          %v1805 = vlaneseq
          %v1806 = vshrl.u32 %v1805, 7
          %v1807 = vsub.s32 0, %v1806
          %v1808 = vrot.slane %v1803, %v1807
          %v1809 = vlaneseq
          %v1810 = vshrl.u32 %v1809, 7
          %v1811 = vsub.s32 1, %v1810
          %v1812 = vrot.slane %v1803, %v1811
          %v1847 = vunpack.c.l.b16 %v1771
          %v1848 = vunpack.c.h.b16 %v1771
          %v1849 = vunpack.c.l.b16 %v1772
          %v1850 = vunpack.c.h.b16 %v1772
          %v1851 = vunpack.c.l.b16 %v1773
          %v1852 = vunpack.c.h.b16 %v1773
          %v1853 = vunpack.c.l.b16 %v1774
          %v1854 = vunpack.c.h.b16 %v1774
          %v1855 = vunpack.c.l.b16 %v1775
          %v1856 = vunpack.c.h.b16 %v1775
          %v1857 = vunpack.c.l.b16 %v1776
          %v1858 = vunpack.c.h.b16 %v1776
          %v1859 = vunpack.c.l.b16 %v1777
          %v1860 = vunpack.c.h.b16 %v1777
          %v1861 = vunpack.c.l.b16 %v1778
          %v1862 = vunpack.c.h.b16 %v1778
          %v1863 = vunpack.c.l.b16 %v1779
          %v1864 = vunpack.c.h.b16 %v1779
          %v1865 = vunpack.c.l.b16 %v1780
          %v1866 = vunpack.c.h.b16 %v1780
          %v1867 = vunpack.c.l.b16 %v1781
          %v1868 = vunpack.c.h.b16 %v1781
          %v1869 = vunpack.c.l.b16 %v1782
          %v1870 = vunpack.c.h.b16 %v1782
          %v1871 = vunpack.c.l.b16 %v1783
          %v1872 = vunpack.c.h.b16 %v1783
          %v1873 = vunpack.c.l.b16 %v1784
          %v1874 = vunpack.c.h.b16 %v1784
          %v1875 = vunpack.c.l.b16 %v1785
          %v1876 = vunpack.c.h.b16 %v1785
          %v1877 = vunpack.c.l.b16 %v1786
          %v1878 = vunpack.c.h.b16 %v1786
          %v1879 = vunpack.c.l.b16 %v1787
          %v1880 = vunpack.c.h.b16 %v1787
          %v1881 = vunpack.c.l.b16 %v1788
          %v1882 = vunpack.c.h.b16 %v1788
          %v1883 = vunpack.c.l.b16 %v1789
          %v1884 = vunpack.c.h.b16 %v1789
          %v1885 = vunpack.c.l.b16 %v1790
          %v1886 = vunpack.c.h.b16 %v1790
          %v1887 = vunpack.c.l.b16 %v1791
          %v1888 = vunpack.c.h.b16 %v1791
          %v1889 = vunpack.c.l.b16 %v1792
          %v1890 = vunpack.c.h.b16 %v1792
          %v1891 = vunpack.c.l.b16 %v1793
          %v1892 = vunpack.c.h.b16 %v1793
          %v1893 = vunpack.c.l.b16 %v1794
          %v1894 = vunpack.c.h.b16 %v1794
          %v1895 = vunpack.c.l.b16 %v1795
          %v1896 = vunpack.c.h.b16 %v1795
          %v1897 = vunpack.c.l.b16 %v1796
          %v1898 = vunpack.c.h.b16 %v1796
          %v1899 = vunpack.c.l.b16 %v1797
          %v1900 = vunpack.c.h.b16 %v1797
          %v1901 = vunpack.c.l.b16 %v1798
          %v1902 = vunpack.c.h.b16 %v1798
          %v1903 = vunpack.c.l.b16 %v1799
          %v1904 = vunpack.c.h.b16 %v1799
          %v1905 = vunpack.c.l.b16 %v1800
          %v1906 = vunpack.c.h.b16 %v1800
          %v1907 = vunpack.c.l.b16 %v1801
          %v1908 = vunpack.c.h.b16 %v1801
          %v1909 = vunpack.c.l.b16 %v1802
          %v1910 = vunpack.c.h.b16 %v1802
          %v1911 = vpack.c.b16 %v1849, %v1847
          %v1912 = vpack.c.b16 %v1850, %v1848
          %v1913 = vpack.c.b16 %v1853, %v1851
          %v1914 = vpack.c.b16 %v1854, %v1852
          %v1915 = vpack.c.b16 %v1857, %v1855
          %v1916 = vpack.c.b16 %v1858, %v1856
          %v1917 = vpack.c.b16 %v1861, %v1859
          %v1918 = vpack.c.b16 %v1862, %v1860
          %v1919 = vpack.c.b16 %v1865, %v1863
          %v1920 = vpack.c.b16 %v1866, %v1864
          %v1921 = vpack.c.b16 %v1869, %v1867
          %v1922 = vpack.c.b16 %v1870, %v1868
          %v1923 = vpack.c.b16 %v1873, %v1871
          %v1924 = vpack.c.b16 %v1874, %v1872
          %v1925 = vpack.c.b16 %v1877, %v1875
          %v1926 = vpack.c.b16 %v1878, %v1876
          %v1927 = vpack.c.b16 %v1881, %v1879
          %v1928 = vpack.c.b16 %v1882, %v1880
          %v1929 = vpack.c.b16 %v1885, %v1883
          %v1930 = vpack.c.b16 %v1886, %v1884
          %v1931 = vpack.c.b16 %v1889, %v1887
          %v1932 = vpack.c.b16 %v1890, %v1888
          %v1933 = vpack.c.b16 %v1893, %v1891
          %v1934 = vpack.c.b16 %v1894, %v1892
          %v1935 = vpack.c.b16 %v1897, %v1895
          %v1936 = vpack.c.b16 %v1898, %v1896
          %v1937 = vpack.c.b16 %v1901, %v1899
          %v1938 = vpack.c.b16 %v1902, %v1900
          %v1939 = vpack.c.b16 %v1905, %v1903
          %v1940 = vpack.c.b16 %v1906, %v1904
          %v1941 = vpack.c.b16 %v1909, %v1907
          %v1942 = vpack.c.b16 %v1910, %v1908
          %1975 = vmatprep.subr.bf16.mxu0 %v1926
          %1976 = vmatpush1.bf16.msra.mxu0 %v1925
          %1977 = vmatprep.subr.bf16.mxu0 %v1924
          %1978 = vmatpush1.bf16.msra.mxu0 %v1923
          %1979 = vmatprep.subr.bf16.mxu0 %v1922
          %1980 = vmatpush1.bf16.msra.mxu0 %v1921
          %1981 = vmatprep.subr.bf16.mxu0 %v1920
          %1982 = vmatpush1.bf16.msra.mxu0 %v1919
          %1983 = vmatprep.subr.bf16.mxu0 %v1918
          %1984 = vmatpush1.bf16.msra.mxu0 %v1917
          %1985 = vmatprep.subr.bf16.mxu0 %v1916
          %1986 = vmatpush1.bf16.msra.mxu0 %v1915
          %1987 = vmatprep.subr.bf16.mxu0 %v1914
          %1988 = vmatpush1.bf16.msra.mxu0 %v1913
          %1989 = vmatprep.subr.bf16.mxu0 %v1912
          %1990 = vmatpush1.bf16.msra.mxu0 %v1911
          %1991 = vmatprep.subr.bf16.mxu0 %v1942
          %1992 = vmatpush2.bf16.msra.mxu0 %v1941
          %1993 = vmatprep.subr.bf16.mxu0 %v1940
          %1994 = vmatpush2.bf16.msra.mxu0 %v1939
          %1995 = vmatprep.subr.bf16.mxu0 %v1938
          %1996 = vmatpush2.bf16.msra.mxu0 %v1937
          %1997 = vmatprep.subr.bf16.mxu0 %v1936
          %1998 = vmatpush2.bf16.msra.mxu0 %v1935
          %1999 = vmatprep.subr.bf16.mxu0 %v1934
          %2000 = vmatpush2.bf16.msra.mxu0 %v1933
          %2001 = vmatprep.subr.bf16.mxu0 %v1932
          %2002 = vmatpush2.bf16.msra.mxu0 %v1931
          %2003 = vmatprep.subr.bf16.mxu0 %v1930
          %2004 = vmatpush2.bf16.msra.mxu0 %v1929
          %2005 = vmatprep.subr.bf16.mxu0 %v1928
          %2006 = vmatpush2.bf16.msra.mxu0 %v1927
          %2007 = vmatprep.mubr.bf16.mxu0 %v1740
          %2008 = vmatmul.mubr.bf16.gmra.mxu0 %v1739
          %v2009 = vpop.f32.mrf.mxu0
          %v2010 = vadd.f32 %v1808, %v2009
          %v2011 = vpop.f32.mrf.mxu0
          %v2012 = vadd.f32 %v1812, %v2011
          %v2013 = vpop.f32.mrf.mxu0
          %v2014 = vadd.f32 %v1808, %v2013
          %v2015 = vpop.f32.mrf.mxu0
          %v2016 = vadd.f32 %v1812, %v2015
          %2017 = vmatprep.mubr.bf16.mxu0 %v1742
          %2018 = vmatmul.mubr.bf16.gmra.mxu0 %v1741
          %v2019 = vpop.f32.mrf.mxu0
          %v2020 = vadd.f32 %v1808, %v2019
          %v2021 = vpop.f32.mrf.mxu0
          %v2022 = vadd.f32 %v1812, %v2021
          %v2023 = vpop.f32.mrf.mxu0
          %v2024 = vadd.f32 %v1808, %v2023
          %v2025 = vpop.f32.mrf.mxu0
          %v2026 = vadd.f32 %v1812, %v2025
          %2027 = vmatprep.mubr.bf16.mxu0 %v1744
          %2028 = vmatmul.mubr.bf16.gmra.mxu0 %v1743
          %v2029 = vpop.f32.mrf.mxu0
          %v2030 = vadd.f32 %v1808, %v2029
          %v2031 = vpop.f32.mrf.mxu0
          %v2032 = vadd.f32 %v1812, %v2031
          %v2033 = vpop.f32.mrf.mxu0
          %v2034 = vadd.f32 %v1808, %v2033
          %v2035 = vpop.f32.mrf.mxu0
          %v2036 = vadd.f32 %v1812, %v2035
          %2037 = vmatprep.mubr.bf16.mxu0 %v1746
          %2038 = vmatmul.mubr.bf16.gmra.mxu0 %v1745
          %v2039 = vpop.f32.mrf.mxu0
          %v2040 = vadd.f32 %v1808, %v2039
          %v2041 = vpop.f32.mrf.mxu0
          %v2042 = vadd.f32 %v1812, %v2041
          %v2043 = vpop.f32.mrf.mxu0
          %v2044 = vadd.f32 %v1808, %v2043
          %v2045 = vpop.f32.mrf.mxu0
          %v2046 = vadd.f32 %v1812, %v2045
          %2047 = vmatprep.mubr.bf16.mxu0 %v1748
          %2048 = vmatmul.mubr.bf16.gmra.mxu0 %v1747
          %v2049 = vpop.f32.mrf.mxu0
          %v2050 = vadd.f32 %v1808, %v2049
          %v2051 = vpop.f32.mrf.mxu0
          %v2052 = vadd.f32 %v1812, %v2051
          %v2053 = vpop.f32.mrf.mxu0
          %v2054 = vadd.f32 %v1808, %v2053
          %v2055 = vpop.f32.mrf.mxu0
          %v2056 = vadd.f32 %v1812, %v2055
          %2057 = vmatprep.mubr.bf16.mxu0 %v1750
          %2058 = vmatmul.mubr.bf16.gmra.mxu0 %v1749
          %v2059 = vpop.f32.mrf.mxu0
          %v2060 = vadd.f32 %v1808, %v2059
          %v2061 = vpop.f32.mrf.mxu0
          %v2062 = vadd.f32 %v1812, %v2061
          %v2063 = vpop.f32.mrf.mxu0
          %v2064 = vadd.f32 %v1808, %v2063
          %v2065 = vpop.f32.mrf.mxu0
          %v2066 = vadd.f32 %v1812, %v2065
          %2067 = vmatprep.mubr.bf16.mxu0 %v1752
          %2068 = vmatmul.mubr.bf16.gmra.mxu0 %v1751
          %v2069 = vpop.f32.mrf.mxu0
          %v2070 = vadd.f32 %v1808, %v2069
          %v2071 = vpop.f32.mrf.mxu0
          %v2072 = vadd.f32 %v1812, %v2071
          %v2073 = vpop.f32.mrf.mxu0
          %v2074 = vadd.f32 %v1808, %v2073
          %v2075 = vpop.f32.mrf.mxu0
          %v2076 = vadd.f32 %v1812, %v2075
          %2077 = vmatprep.mubr.bf16.mxu0 %v1754
          %2078 = vmatmul.mubr.bf16.gmra.mxu0 %v1753
          %v2079 = vpop.f32.mrf.mxu0
          %v2080 = vadd.f32 %v1808, %v2079
          %v2081 = vpop.f32.mrf.mxu0
          %v2082 = vadd.f32 %v1812, %v2081
          %v2083 = vpop.f32.mrf.mxu0
          %v2084 = vadd.f32 %v1808, %v2083
          %v2085 = vpop.f32.mrf.mxu0
          %v2086 = vadd.f32 %v1812, %v2085
          %2087 = vmatprep.mubr.bf16.mxu0 %v1756
          %2088 = vmatmul.mubr.bf16.gmra.mxu0 %v1755
          %v2089 = vpop.f32.mrf.mxu0
          %v2090 = vadd.f32 %v1808, %v2089
          %v2091 = vpop.f32.mrf.mxu0
          %v2092 = vadd.f32 %v1812, %v2091
          %v2093 = vpop.f32.mrf.mxu0
          %v2094 = vadd.f32 %v1808, %v2093
          %v2095 = vpop.f32.mrf.mxu0
          %v2096 = vadd.f32 %v1812, %v2095
          %2097 = vmatprep.mubr.bf16.mxu0 %v1758
          %2098 = vmatmul.mubr.bf16.gmra.mxu0 %v1757
          %v2099 = vpop.f32.mrf.mxu0
          %v2100 = vadd.f32 %v1808, %v2099
          %v2101 = vpop.f32.mrf.mxu0
          %v2102 = vadd.f32 %v1812, %v2101
          %v2103 = vpop.f32.mrf.mxu0
          %v2104 = vadd.f32 %v1808, %v2103
          %v2105 = vpop.f32.mrf.mxu0
          %v2106 = vadd.f32 %v1812, %v2105
          %2107 = vmatprep.mubr.bf16.mxu0 %v1760
          %2108 = vmatmul.mubr.bf16.gmra.mxu0 %v1759
          %v2109 = vpop.f32.mrf.mxu0
          %v2110 = vadd.f32 %v1808, %v2109
          %v2111 = vpop.f32.mrf.mxu0
          %v2112 = vadd.f32 %v1812, %v2111
          %v2113 = vpop.f32.mrf.mxu0
          %v2114 = vadd.f32 %v1808, %v2113
          %v2115 = vpop.f32.mrf.mxu0
          %v2116 = vadd.f32 %v1812, %v2115
          %2117 = vmatprep.mubr.bf16.mxu0 %v1762
          %2118 = vmatmul.mubr.bf16.gmra.mxu0 %v1761
          %v2119 = vpop.f32.mrf.mxu0
          %v2120 = vadd.f32 %v1808, %v2119
          %v2121 = vpop.f32.mrf.mxu0
          %v2122 = vadd.f32 %v1812, %v2121
          %v2123 = vpop.f32.mrf.mxu0
          %v2124 = vadd.f32 %v1808, %v2123
          %v2125 = vpop.f32.mrf.mxu0
          %v2126 = vadd.f32 %v1812, %v2125
          %2127 = vmatprep.mubr.bf16.mxu0 %v1764
          %2128 = vmatmul.mubr.bf16.gmra.mxu0 %v1763
          %v2129 = vpop.f32.mrf.mxu0
          %v2130 = vadd.f32 %v1808, %v2129
          %v2131 = vpop.f32.mrf.mxu0
          %v2132 = vadd.f32 %v1812, %v2131
          %v2133 = vpop.f32.mrf.mxu0
          %v2134 = vadd.f32 %v1808, %v2133
          %v2135 = vpop.f32.mrf.mxu0
          %v2136 = vadd.f32 %v1812, %v2135
          %2137 = vmatprep.mubr.bf16.mxu0 %v1766
          %2138 = vmatmul.mubr.bf16.gmra.mxu0 %v1765
          %v2139 = vpop.f32.mrf.mxu0
          %v2140 = vadd.f32 %v1808, %v2139
          %v2141 = vpop.f32.mrf.mxu0
          %v2142 = vadd.f32 %v1812, %v2141
          %v2143 = vpop.f32.mrf.mxu0
          %v2144 = vadd.f32 %v1808, %v2143
          %v2145 = vpop.f32.mrf.mxu0
          %v2146 = vadd.f32 %v1812, %v2145
          %2147 = vmatprep.mubr.bf16.mxu0 %v1768
          %2148 = vmatmul.mubr.bf16.gmra.mxu0 %v1767
          %v2149 = vpop.f32.mrf.mxu0
          %v2150 = vadd.f32 %v1808, %v2149
          %v2151 = vpop.f32.mrf.mxu0
          %v2152 = vadd.f32 %v1812, %v2151
          %v2153 = vpop.f32.mrf.mxu0
          %v2154 = vadd.f32 %v1808, %v2153
          %v2155 = vpop.f32.mrf.mxu0
          %v2156 = vadd.f32 %v1812, %v2155
          %2157 = vmatprep.mubr.bf16.mxu0 %v1770
          %2158 = vmatmul.mubr.bf16.gmra.mxu0 %v1769
          %v2159 = vpop.f32.mrf.mxu0
          %v2160 = vadd.f32 %v1808, %v2159
          %v2161 = vpop.f32.mrf.mxu0
          %v2162 = vadd.f32 %v1812, %v2161
          %v2163 = vpop.f32.mrf.mxu0
          %v2164 = vadd.f32 %v1808, %v2163
          %v2165 = vpop.f32.mrf.mxu0
          %v2166 = vadd.f32 %v1812, %v2165
          %2167 = vdwg.mxu0
          %v2168 = vtanh.pop %v2010
          %v2169 = vtanh.pop %v2012
          %v2170 = vtanh.pop %v2014
          %v2171 = vtanh.pop %v2016
          %v2172 = vtanh.pop %v2020
          %v2173 = vtanh.pop %v2022
          %v2174 = vtanh.pop %v2024
          %v2175 = vtanh.pop %v2026
          %v2176 = vtanh.pop %v2030
          %v2177 = vtanh.pop %v2032
          %v2178 = vtanh.pop %v2034
          %v2179 = vtanh.pop %v2036
          %v2180 = vtanh.pop %v2040
          %v2181 = vtanh.pop %v2042
          %v2182 = vtanh.pop %v2044
          %v2183 = vtanh.pop %v2046
          %v2184 = vtanh.pop %v2050
          %v2185 = vtanh.pop %v2052
          %v2186 = vtanh.pop %v2054
          %v2187 = vtanh.pop %v2056
          %v2188 = vtanh.pop %v2060
          %v2189 = vtanh.pop %v2062
          %v2190 = vtanh.pop %v2064
          %v2191 = vtanh.pop %v2066
          %v2192 = vtanh.pop %v2070
          %v2193 = vtanh.pop %v2072
          %v2194 = vtanh.pop %v2074
          %v2195 = vtanh.pop %v2076
          %v2196 = vtanh.pop %v2080
          %v2197 = vtanh.pop %v2082
          %v2198 = vtanh.pop %v2084
          %v2199 = vtanh.pop %v2086
          %v2200 = vtanh.pop %v2090
          %v2201 = vtanh.pop %v2092
          %v2202 = vtanh.pop %v2094
          %v2203 = vtanh.pop %v2096
          %v2204 = vtanh.pop %v2100
          %v2205 = vtanh.pop %v2102
          %v2206 = vtanh.pop %v2104
          %v2207 = vtanh.pop %v2106
          %v2208 = vtanh.pop %v2110
          %v2209 = vtanh.pop %v2112
          %v2210 = vtanh.pop %v2114
          %v2211 = vtanh.pop %v2116
          %v2212 = vtanh.pop %v2120
          %v2213 = vtanh.pop %v2122
          %v2214 = vtanh.pop %v2124
          %v2215 = vtanh.pop %v2126
          %v2216 = vtanh.pop %v2130
          %v2217 = vtanh.pop %v2132
          %v2218 = vtanh.pop %v2134
          %v2219 = vtanh.pop %v2136
          %v2220 = vtanh.pop %v2140
          %v2221 = vtanh.pop %v2142
          %v2222 = vtanh.pop %v2144
          %v2223 = vtanh.pop %v2146
          %v2224 = vtanh.pop %v2150
          %v2225 = vtanh.pop %v2152
          %v2226 = vtanh.pop %v2154
          %v2227 = vtanh.pop %v2156
          %v2228 = vtanh.pop %v2160
          %v2229 = vtanh.pop %v2162
          %v2230 = vtanh.pop %v2164
          %v2231 = vtanh.pop %v2166
          %2233 = vset.pattern.permute.xlu0 0
          %2234 = vperm.xlu0 %2233, %v356
          %v2235 = vpop.permute.xlu0 %2234
          %2238 = vset.pattern.permute.xlu0 0
          %2239 = vperm.xlu0 %2238, %v357
          %v2240 = vpop.permute.xlu0 %2239
          %2243 = vset.pattern.permute.xlu0 0
          %2244 = vperm.xlu0 %2243, %v358
          %v2245 = vpop.permute.xlu0 %2244
          %2248 = vset.pattern.permute.xlu0 0
          %2249 = vperm.xlu0 %2248, %v359
          %v2250 = vpop.permute.xlu0 %2249
          %2253 = vset.pattern.permute.xlu0 0
          %2254 = vperm.xlu0 %2253, %v360
          %v2255 = vpop.permute.xlu0 %2254
          %2258 = vset.pattern.permute.xlu0 0
          %2259 = vperm.xlu0 %2258, %v361
          %v2260 = vpop.permute.xlu0 %2259
          %2263 = vset.pattern.permute.xlu0 0
          %2264 = vperm.xlu0 %2263, %v362
          %v2265 = vpop.permute.xlu0 %2264
          %2268 = vset.pattern.permute.xlu0 0
          %2269 = vperm.xlu0 %2268, %v363
          %v2270 = vpop.permute.xlu0 %2269
          %2273 = vset.pattern.permute.xlu0 0
          %2274 = vperm.xlu0 %2273, %v364
          %v2275 = vpop.permute.xlu0 %2274
          %2278 = vset.pattern.permute.xlu0 0
          %2279 = vperm.xlu0 %2278, %v365
          %v2280 = vpop.permute.xlu0 %2279
          %2283 = vset.pattern.permute.xlu0 0
          %2284 = vperm.xlu0 %2283, %v366
          %v2285 = vpop.permute.xlu0 %2284
          %2288 = vset.pattern.permute.xlu0 0
          %2289 = vperm.xlu0 %2288, %v367
          %v2290 = vpop.permute.xlu0 %2289
          %2293 = vset.pattern.permute.xlu0 0
          %2294 = vperm.xlu0 %2293, %v368
          %v2295 = vpop.permute.xlu0 %2294
          %2298 = vset.pattern.permute.xlu0 0
          %2299 = vperm.xlu0 %2298, %v369
          %v2300 = vpop.permute.xlu0 %2299
          %2303 = vset.pattern.permute.xlu0 0
          %2304 = vperm.xlu0 %2303, %v370
          %v2305 = vpop.permute.xlu0 %2304
          %2308 = vset.pattern.permute.xlu0 0
          %2309 = vperm.xlu0 %2308, %v371
          %v2310 = vpop.permute.xlu0 %2309
          %2313 = vset.pattern.permute.xlu0 0
          %2314 = vperm.xlu0 %2313, %v372
          %v2315 = vpop.permute.xlu0 %2314
          %2318 = vset.pattern.permute.xlu0 0
          %2319 = vperm.xlu0 %2318, %v373
          %v2320 = vpop.permute.xlu0 %2319
          %2323 = vset.pattern.permute.xlu0 0
          %2324 = vperm.xlu0 %2323, %v374
          %v2325 = vpop.permute.xlu0 %2324
          %2328 = vset.pattern.permute.xlu0 0
          %2329 = vperm.xlu0 %2328, %v375
          %v2330 = vpop.permute.xlu0 %2329
          %2333 = vset.pattern.permute.xlu0 0
          %2334 = vperm.xlu0 %2333, %v376
          %v2335 = vpop.permute.xlu0 %2334
          %2338 = vset.pattern.permute.xlu0 0
          %2339 = vperm.xlu0 %2338, %v377
          %v2340 = vpop.permute.xlu0 %2339
          %2343 = vset.pattern.permute.xlu0 0
          %2344 = vperm.xlu0 %2343, %v378
          %v2345 = vpop.permute.xlu0 %2344
          %2348 = vset.pattern.permute.xlu0 0
          %2349 = vperm.xlu0 %2348, %v379
          %v2350 = vpop.permute.xlu0 %2349
          %2353 = vset.pattern.permute.xlu0 0
          %2354 = vperm.xlu0 %2353, %v380
          %v2355 = vpop.permute.xlu0 %2354
          %2358 = vset.pattern.permute.xlu0 0
          %2359 = vperm.xlu0 %2358, %v381
          %v2360 = vpop.permute.xlu0 %2359
          %2363 = vset.pattern.permute.xlu0 0
          %2364 = vperm.xlu0 %2363, %v382
          %v2365 = vpop.permute.xlu0 %2364
          %2368 = vset.pattern.permute.xlu0 0
          %2369 = vperm.xlu0 %2368, %v383
          %v2370 = vpop.permute.xlu0 %2369
          %2373 = vset.pattern.permute.xlu0 0
          %2374 = vperm.xlu0 %2373, %v384
          %v2375 = vpop.permute.xlu0 %2374
          %2378 = vset.pattern.permute.xlu0 0
          %2379 = vperm.xlu0 %2378, %v385
          %v2380 = vpop.permute.xlu0 %2379
          %2383 = vset.pattern.permute.xlu0 0
          %2384 = vperm.xlu0 %2383, %v386
          %v2385 = vpop.permute.xlu0 %2384
          %2388 = vset.pattern.permute.xlu0 0
          %2389 = vperm.xlu0 %2388, %v387
          %v2390 = vpop.permute.xlu0 %2389
          %v2392 = vmul.f32 %v2168, %v2235
          %v2393 = vmul.f32 %v2169, %v2235
          %v2394 = vmul.f32 %v2170, %v2240
          %v2395 = vmul.f32 %v2171, %v2240
          %v2396 = vmul.f32 %v2172, %v2245
          %v2397 = vmul.f32 %v2173, %v2245
          %v2398 = vmul.f32 %v2174, %v2250
          %v2399 = vmul.f32 %v2175, %v2250
          %v2400 = vmul.f32 %v2176, %v2255
          %v2401 = vmul.f32 %v2177, %v2255
          %v2402 = vmul.f32 %v2178, %v2260
          %v2403 = vmul.f32 %v2179, %v2260
          %v2404 = vmul.f32 %v2180, %v2265
          %v2405 = vmul.f32 %v2181, %v2265
          %v2406 = vmul.f32 %v2182, %v2270
          %v2407 = vmul.f32 %v2183, %v2270
          %v2408 = vmul.f32 %v2184, %v2275
          %v2409 = vmul.f32 %v2185, %v2275
          %v2410 = vmul.f32 %v2186, %v2280
          %v2411 = vmul.f32 %v2187, %v2280
          %v2412 = vmul.f32 %v2188, %v2285
          %v2413 = vmul.f32 %v2189, %v2285
          %v2414 = vmul.f32 %v2190, %v2290
          %v2415 = vmul.f32 %v2191, %v2290
          %v2416 = vmul.f32 %v2192, %v2295
          %v2417 = vmul.f32 %v2193, %v2295
          %v2418 = vmul.f32 %v2194, %v2300
          %v2419 = vmul.f32 %v2195, %v2300
          %v2420 = vmul.f32 %v2196, %v2305
          %v2421 = vmul.f32 %v2197, %v2305
          %v2422 = vmul.f32 %v2198, %v2310
          %v2423 = vmul.f32 %v2199, %v2310
          %v2424 = vmul.f32 %v2200, %v2315
          %v2425 = vmul.f32 %v2201, %v2315
          %v2426 = vmul.f32 %v2202, %v2320
          %v2427 = vmul.f32 %v2203, %v2320
          %v2428 = vmul.f32 %v2204, %v2325
          %v2429 = vmul.f32 %v2205, %v2325
          %v2430 = vmul.f32 %v2206, %v2330
          %v2431 = vmul.f32 %v2207, %v2330
          %v2432 = vmul.f32 %v2208, %v2335
          %v2433 = vmul.f32 %v2209, %v2335
          %v2434 = vmul.f32 %v2210, %v2340
          %v2435 = vmul.f32 %v2211, %v2340
          %v2436 = vmul.f32 %v2212, %v2345
          %v2437 = vmul.f32 %v2213, %v2345
          %v2438 = vmul.f32 %v2214, %v2350
          %v2439 = vmul.f32 %v2215, %v2350
          %v2440 = vmul.f32 %v2216, %v2355
          %v2441 = vmul.f32 %v2217, %v2355
          %v2442 = vmul.f32 %v2218, %v2360
          %v2443 = vmul.f32 %v2219, %v2360
          %v2444 = vmul.f32 %v2220, %v2365
          %v2445 = vmul.f32 %v2221, %v2365
          %v2446 = vmul.f32 %v2222, %v2370
          %v2447 = vmul.f32 %v2223, %v2370
          %v2448 = vmul.f32 %v2224, %v2375
          %v2449 = vmul.f32 %v2225, %v2375
          %v2450 = vmul.f32 %v2226, %v2380
          %v2451 = vmul.f32 %v2227, %v2380
          %v2452 = vmul.f32 %v2228, %v2385
          %v2453 = vmul.f32 %v2229, %v2385
          %v2454 = vmul.f32 %v2230, %v2390
          %v2455 = vmul.f32 %v2231, %v2390
          %v2456 = vpack.c.bf16 %v2394, %v2392
          %v2457 = vpack.c.bf16 %v2395, %v2393
          %v2458 = vpack.c.bf16 %v2398, %v2396
          %v2459 = vpack.c.bf16 %v2399, %v2397
          %v2460 = vpack.c.bf16 %v2402, %v2400
          %v2461 = vpack.c.bf16 %v2403, %v2401
          %v2462 = vpack.c.bf16 %v2406, %v2404
          %v2463 = vpack.c.bf16 %v2407, %v2405
          %v2464 = vpack.c.bf16 %v2410, %v2408
          %v2465 = vpack.c.bf16 %v2411, %v2409
          %v2466 = vpack.c.bf16 %v2414, %v2412
          %v2467 = vpack.c.bf16 %v2415, %v2413
          %v2468 = vpack.c.bf16 %v2418, %v2416
          %v2469 = vpack.c.bf16 %v2419, %v2417
          %v2470 = vpack.c.bf16 %v2422, %v2420
          %v2471 = vpack.c.bf16 %v2423, %v2421
          %v2472 = vpack.c.bf16 %v2426, %v2424
          %v2473 = vpack.c.bf16 %v2427, %v2425
          %v2474 = vpack.c.bf16 %v2430, %v2428
          %v2475 = vpack.c.bf16 %v2431, %v2429
          %v2476 = vpack.c.bf16 %v2434, %v2432
          %v2477 = vpack.c.bf16 %v2435, %v2433
          %v2478 = vpack.c.bf16 %v2438, %v2436
          %v2479 = vpack.c.bf16 %v2439, %v2437
          %v2480 = vpack.c.bf16 %v2442, %v2440
          %v2481 = vpack.c.bf16 %v2443, %v2441
          %v2482 = vpack.c.bf16 %v2446, %v2444
          %v2483 = vpack.c.bf16 %v2447, %v2445
          %v2484 = vpack.c.bf16 %v2450, %v2448
          %v2485 = vpack.c.bf16 %v2451, %v2449
          %v2486 = vpack.c.bf16 %v2454, %v2452
          %v2487 = vpack.c.bf16 %v2455, %v2453
          %v2488 = vld [vmem:[#allocation7] sm:$0xf]
          %v2489 = vld [vmem:[#allocation7 + $0x4] sm:$0xf]
          %v2490 = vld [vmem:[#allocation7 + $0x8] sm:$0xf]
          %v2491 = vld [vmem:[#allocation7 + $0xc] sm:$0xf]
          %v2492 = vld [vmem:[#allocation7 + $0x10] sm:$0xf]
          %v2493 = vld [vmem:[#allocation7 + $0x14] sm:$0xf]
          %v2494 = vld [vmem:[#allocation7 + $0x18] sm:$0xf]
          %v2495 = vld [vmem:[#allocation7 + $0x1c] sm:$0xf]
          %v2496 = vld [vmem:[#allocation7 + $0x20] sm:$0xf]
          %v2497 = vld [vmem:[#allocation7 + $0x24] sm:$0xf]
          %v2498 = vld [vmem:[#allocation7 + $0x28] sm:$0xf]
          %v2499 = vld [vmem:[#allocation7 + $0x2c] sm:$0xf]
          %v2500 = vld [vmem:[#allocation7 + $0x30] sm:$0xf]
          %v2501 = vld [vmem:[#allocation7 + $0x34] sm:$0xf]
          %v2502 = vld [vmem:[#allocation7 + $0x38] sm:$0xf]
          %v2503 = vld [vmem:[#allocation7 + $0x3c] sm:$0xf]
          %v2504 = vld [vmem:[#allocation7 + $0x40] sm:$0xf]
          %v2505 = vld [vmem:[#allocation7 + $0x44] sm:$0xf]
          %v2506 = vld [vmem:[#allocation7 + $0x48] sm:$0xf]
          %v2507 = vld [vmem:[#allocation7 + $0x4c] sm:$0xf]
          %v2508 = vld [vmem:[#allocation7 + $0x50] sm:$0xf]
          %v2509 = vld [vmem:[#allocation7 + $0x54] sm:$0xf]
          %v2510 = vld [vmem:[#allocation7 + $0x58] sm:$0xf]
          %v2511 = vld [vmem:[#allocation7 + $0x5c] sm:$0xf]
          %v2512 = vld [vmem:[#allocation7 + $0x60] sm:$0xf]
          %v2513 = vld [vmem:[#allocation7 + $0x64] sm:$0xf]
          %v2514 = vld [vmem:[#allocation7 + $0x68] sm:$0xf]
          %v2515 = vld [vmem:[#allocation7 + $0x6c] sm:$0xf]
          %v2516 = vld [vmem:[#allocation7 + $0x70] sm:$0xf]
          %v2517 = vld [vmem:[#allocation7 + $0x74] sm:$0xf]
          %v2518 = vld [vmem:[#allocation7 + $0x78] sm:$0xf]
          %v2519 = vld [vmem:[#allocation7 + $0x7c] sm:$0xf]
          %v2520 = vld [vmem:[%s6] sm:$0x1]
          %v2522 = vlaneseq
          %v2523 = vshrl.u32 %v2522, 7
          %v2524 = vsub.s32 0, %v2523
          %v2525 = vrot.slane %v2520, %v2524
          %v2559 = vunpack.c.l.b16 %v2488
          %v2560 = vunpack.c.l.b16 %v2489
          %v2561 = vunpack.c.l.b16 %v2490
          %v2562 = vunpack.c.l.b16 %v2491
          %v2563 = vunpack.c.l.b16 %v2492
          %v2564 = vunpack.c.l.b16 %v2493
          %v2565 = vunpack.c.l.b16 %v2494
          %v2566 = vunpack.c.l.b16 %v2495
          %v2567 = vunpack.c.l.b16 %v2496
          %v2568 = vunpack.c.l.b16 %v2497
          %v2569 = vunpack.c.l.b16 %v2498
          %v2570 = vunpack.c.l.b16 %v2499
          %v2571 = vunpack.c.l.b16 %v2500
          %v2572 = vunpack.c.l.b16 %v2501
          %v2573 = vunpack.c.l.b16 %v2502
          %v2574 = vunpack.c.l.b16 %v2503
          %v2575 = vunpack.c.l.b16 %v2504
          %v2576 = vunpack.c.l.b16 %v2505
          %v2577 = vunpack.c.l.b16 %v2506
          %v2578 = vunpack.c.l.b16 %v2507
          %v2579 = vunpack.c.l.b16 %v2508
          %v2580 = vunpack.c.l.b16 %v2509
          %v2581 = vunpack.c.l.b16 %v2510
          %v2582 = vunpack.c.l.b16 %v2511
          %v2583 = vunpack.c.l.b16 %v2512
          %v2584 = vunpack.c.l.b16 %v2513
          %v2585 = vunpack.c.l.b16 %v2514
          %v2586 = vunpack.c.l.b16 %v2515
          %v2587 = vunpack.c.l.b16 %v2516
          %v2588 = vunpack.c.l.b16 %v2517
          %v2589 = vunpack.c.l.b16 %v2518
          %v2590 = vunpack.c.l.b16 %v2519
          %v2591 = vpack.c.b16 %v2560, %v2559
          %v2592 = vpack.c.b16 %v2562, %v2561
          %v2593 = vpack.c.b16 %v2564, %v2563
          %v2594 = vpack.c.b16 %v2566, %v2565
          %v2595 = vpack.c.b16 %v2568, %v2567
          %v2596 = vpack.c.b16 %v2570, %v2569
          %v2597 = vpack.c.b16 %v2572, %v2571
          %v2598 = vpack.c.b16 %v2574, %v2573
          %v2599 = vpack.c.b16 %v2576, %v2575
          %v2600 = vpack.c.b16 %v2578, %v2577
          %v2601 = vpack.c.b16 %v2580, %v2579
          %v2602 = vpack.c.b16 %v2582, %v2581
          %v2603 = vpack.c.b16 %v2584, %v2583
          %v2604 = vpack.c.b16 %v2586, %v2585
          %v2605 = vpack.c.b16 %v2588, %v2587
          %v2606 = vpack.c.b16 %v2590, %v2589
          %2623 = vmatprep.subr.bf16.mxu0 0
          %2624 = vmatpush1.bf16.msra.mxu0 %v2598
          %2625 = vmatprep.subr.bf16.mxu0 0
          %2626 = vmatpush1.bf16.msra.mxu0 %v2597
          %2627 = vmatprep.subr.bf16.mxu0 0
          %2628 = vmatpush1.bf16.msra.mxu0 %v2596
          %2629 = vmatprep.subr.bf16.mxu0 0
          %2630 = vmatpush1.bf16.msra.mxu0 %v2595
          %2631 = vmatprep.subr.bf16.mxu0 0
          %2632 = vmatpush1.bf16.msra.mxu0 %v2594
          %2633 = vmatprep.subr.bf16.mxu0 0
          %2634 = vmatpush1.bf16.msra.mxu0 %v2593
          %2635 = vmatprep.subr.bf16.mxu0 0
          %2636 = vmatpush1.bf16.msra.mxu0 %v2592
          %2637 = vmatprep.subr.bf16.mxu0 0
          %2638 = vmatpush1.bf16.msra.mxu0 %v2591
          %2639 = vmatprep.subr.bf16.mxu0 0
          %2640 = vmatpush2.bf16.msra.mxu0 %v2606
          %2641 = vmatprep.subr.bf16.mxu0 0
          %2642 = vmatpush2.bf16.msra.mxu0 %v2605
          %2643 = vmatprep.subr.bf16.mxu0 0
          %2644 = vmatpush2.bf16.msra.mxu0 %v2604
          %2645 = vmatprep.subr.bf16.mxu0 0
          %2646 = vmatpush2.bf16.msra.mxu0 %v2603
          %2647 = vmatprep.subr.bf16.mxu0 0
          %2648 = vmatpush2.bf16.msra.mxu0 %v2602
          %2649 = vmatprep.subr.bf16.mxu0 0
          %2650 = vmatpush2.bf16.msra.mxu0 %v2601
          %2651 = vmatprep.subr.bf16.mxu0 0
          %2652 = vmatpush2.bf16.msra.mxu0 %v2600
          %2653 = vmatprep.subr.bf16.mxu0 0
          %2654 = vmatpush2.bf16.msra.mxu0 %v2599
          %2655 = vmatprep.mubr.bf16.mxu0 %v2457
          %2656 = vmatmul.mubr.bf16.gmra.mxu0 %v2456
          %v2657 = vpop.f32.mrf.mxu0
          %v2658 = vadd.f32 %v2525, %v2657
          %v2659 = vpop.f32.mrf.mxu0
          %v2660 = vpop.f32.mrf.mxu0
          %v2661 = vadd.f32 %v2525, %v2660
          %v2662 = vpop.f32.mrf.mxu0
          %2663 = vmatprep.mubr.bf16.mxu0 %v2459
          %2664 = vmatmul.mubr.bf16.gmra.mxu0 %v2458
          %v2665 = vpop.f32.mrf.mxu0
          %v2666 = vadd.f32 %v2525, %v2665
          %v2667 = vpop.f32.mrf.mxu0
          %v2668 = vpop.f32.mrf.mxu0
          %v2669 = vadd.f32 %v2525, %v2668
          %v2670 = vpop.f32.mrf.mxu0
          %2671 = vmatprep.mubr.bf16.mxu0 %v2461
          %2672 = vmatmul.mubr.bf16.gmra.mxu0 %v2460
          %v2673 = vpop.f32.mrf.mxu0
          %v2674 = vadd.f32 %v2525, %v2673
          %v2675 = vpop.f32.mrf.mxu0
          %v2676 = vpop.f32.mrf.mxu0
          %v2677 = vadd.f32 %v2525, %v2676
          %v2678 = vpop.f32.mrf.mxu0
          %2679 = vmatprep.mubr.bf16.mxu0 %v2463
          %2680 = vmatmul.mubr.bf16.gmra.mxu0 %v2462
          %v2681 = vpop.f32.mrf.mxu0
          %v2682 = vadd.f32 %v2525, %v2681
          %v2683 = vpop.f32.mrf.mxu0
          %v2684 = vpop.f32.mrf.mxu0
          %v2685 = vadd.f32 %v2525, %v2684
          %v2686 = vpop.f32.mrf.mxu0
          %2687 = vmatprep.mubr.bf16.mxu0 %v2465
          %2688 = vmatmul.mubr.bf16.gmra.mxu0 %v2464
          %v2689 = vpop.f32.mrf.mxu0
          %v2690 = vadd.f32 %v2525, %v2689
          %v2691 = vpop.f32.mrf.mxu0
          %v2692 = vpop.f32.mrf.mxu0
          %v2693 = vadd.f32 %v2525, %v2692
          %v2694 = vpop.f32.mrf.mxu0
          %2695 = vmatprep.mubr.bf16.mxu0 %v2467
          %2696 = vmatmul.mubr.bf16.gmra.mxu0 %v2466
          %v2697 = vpop.f32.mrf.mxu0
          %v2698 = vadd.f32 %v2525, %v2697
          %v2699 = vpop.f32.mrf.mxu0
          %v2700 = vpop.f32.mrf.mxu0
          %v2701 = vadd.f32 %v2525, %v2700
          %v2702 = vpop.f32.mrf.mxu0
          %2703 = vmatprep.mubr.bf16.mxu0 %v2469
          %2704 = vmatmul.mubr.bf16.gmra.mxu0 %v2468
          %v2705 = vpop.f32.mrf.mxu0
          %v2706 = vadd.f32 %v2525, %v2705
          %v2707 = vpop.f32.mrf.mxu0
          %v2708 = vpop.f32.mrf.mxu0
          %v2709 = vadd.f32 %v2525, %v2708
          %v2710 = vpop.f32.mrf.mxu0
          %2711 = vmatprep.mubr.bf16.mxu0 %v2471
          %2712 = vmatmul.mubr.bf16.gmra.mxu0 %v2470
          %v2713 = vpop.f32.mrf.mxu0
          %v2714 = vadd.f32 %v2525, %v2713
          %v2715 = vpop.f32.mrf.mxu0
          %v2716 = vpop.f32.mrf.mxu0
          %v2717 = vadd.f32 %v2525, %v2716
          %v2718 = vpop.f32.mrf.mxu0
          %2719 = vmatprep.mubr.bf16.mxu0 %v2473
          %2720 = vmatmul.mubr.bf16.gmra.mxu0 %v2472
          %v2721 = vpop.f32.mrf.mxu0
          %v2722 = vadd.f32 %v2525, %v2721
          %v2723 = vpop.f32.mrf.mxu0
          %v2724 = vpop.f32.mrf.mxu0
          %v2725 = vadd.f32 %v2525, %v2724
          %v2726 = vpop.f32.mrf.mxu0
          %2727 = vmatprep.mubr.bf16.mxu0 %v2475
          %2728 = vmatmul.mubr.bf16.gmra.mxu0 %v2474
          %v2729 = vpop.f32.mrf.mxu0
          %v2730 = vadd.f32 %v2525, %v2729
          %v2731 = vpop.f32.mrf.mxu0
          %v2732 = vpop.f32.mrf.mxu0
          %v2733 = vadd.f32 %v2525, %v2732
          %v2734 = vpop.f32.mrf.mxu0
          %2735 = vmatprep.mubr.bf16.mxu0 %v2477
          %2736 = vmatmul.mubr.bf16.gmra.mxu0 %v2476
          %v2737 = vpop.f32.mrf.mxu0
          %v2738 = vadd.f32 %v2525, %v2737
          %v2739 = vpop.f32.mrf.mxu0
          %v2740 = vpop.f32.mrf.mxu0
          %v2741 = vadd.f32 %v2525, %v2740
          %v2742 = vpop.f32.mrf.mxu0
          %2743 = vmatprep.mubr.bf16.mxu0 %v2479
          %2744 = vmatmul.mubr.bf16.gmra.mxu0 %v2478
          %v2745 = vpop.f32.mrf.mxu0
          %v2746 = vadd.f32 %v2525, %v2745
          %v2747 = vpop.f32.mrf.mxu0
          %v2748 = vpop.f32.mrf.mxu0
          %v2749 = vadd.f32 %v2525, %v2748
          %v2750 = vpop.f32.mrf.mxu0
          %2751 = vmatprep.mubr.bf16.mxu0 %v2481
          %2752 = vmatmul.mubr.bf16.gmra.mxu0 %v2480
          %v2753 = vpop.f32.mrf.mxu0
          %v2754 = vadd.f32 %v2525, %v2753
          %v2755 = vpop.f32.mrf.mxu0
          %v2756 = vpop.f32.mrf.mxu0
          %v2757 = vadd.f32 %v2525, %v2756
          %v2758 = vpop.f32.mrf.mxu0
          %2759 = vmatprep.mubr.bf16.mxu0 %v2483
          %2760 = vmatmul.mubr.bf16.gmra.mxu0 %v2482
          %v2761 = vpop.f32.mrf.mxu0
          %v2762 = vadd.f32 %v2525, %v2761
          %v2763 = vpop.f32.mrf.mxu0
          %v2764 = vpop.f32.mrf.mxu0
          %v2765 = vadd.f32 %v2525, %v2764
          %v2766 = vpop.f32.mrf.mxu0
          %2767 = vmatprep.mubr.bf16.mxu0 %v2485
          %2768 = vmatmul.mubr.bf16.gmra.mxu0 %v2484
          %v2769 = vpop.f32.mrf.mxu0
          %v2770 = vadd.f32 %v2525, %v2769
          %v2771 = vpop.f32.mrf.mxu0
          %v2772 = vpop.f32.mrf.mxu0
          %v2773 = vadd.f32 %v2525, %v2772
          %v2774 = vpop.f32.mrf.mxu0
          %2775 = vmatprep.mubr.bf16.mxu0 %v2487
          %2776 = vmatmul.mubr.bf16.gmra.mxu0 %v2486
          %v2777 = vpop.f32.mrf.mxu0
          %v2778 = vadd.f32 %v2525, %v2777
          %v2779 = vpop.f32.mrf.mxu0
          %v2780 = vpop.f32.mrf.mxu0
          %v2781 = vadd.f32 %v2525, %v2780
          %v2782 = vpop.f32.mrf.mxu0
          %2783 = vdwg.mxu0
          %v2784 = vlaneseq
          %v2785 = vshrl.u32 %v2784, 7
          %v2786 = vadd.s32 %v2785, 8
          %v2787 = vadd.s32 %v2785, 16
          %v2788 = vadd.s32 %v2785, 24
          %v2789 = vadd.s32 %v2785, 32
          %v2790 = vadd.s32 %v2785, 40
          %v2791 = vadd.s32 %v2785, 48
          %v2792 = vadd.s32 %v2785, 56
          %v2793 = vadd.s32 %v2785, 64
          %v2794 = vadd.s32 %v2785, 72
          %v2795 = vadd.s32 %v2785, 80
          %v2796 = vadd.s32 %v2785, 88
          %v2797 = vadd.s32 %v2785, 96
          %v2798 = vadd.s32 %v2785, 104
          %v2799 = vadd.s32 %v2785, 112
          %v2800 = vadd.s32 %v2785, 120
          %v2801 = vadd.s32 %v2785, 128
          %v2802 = vadd.s32 %v2785, 136
          %v2803 = vadd.s32 %v2785, 144
          %v2804 = vadd.s32 %v2785, 152
          %v2805 = vadd.s32 %v2785, 160
          %v2806 = vadd.s32 %v2785, 168
          %v2807 = vadd.s32 %v2785, 176
          %v2808 = vadd.s32 %v2785, 184
          %v2809 = vadd.s32 %v2785, 192
          %v2810 = vadd.s32 %v2785, 200
          %v2811 = vadd.s32 %v2785, 208
          %v2812 = vadd.s32 %v2785, 216
          %v2813 = vadd.s32 %v2785, 224
          %v2814 = vadd.s32 %v2785, 232
          %v2815 = vadd.s32 %v2785, 240
          %v2816 = vadd.s32 %v2785, 248
          %v2817 = vstv %s287
          %v2818 = vadd.s32 %v2785, %v2817
          %v2819 = vadd.s32 %v2786, %v2817
          %v2820 = vadd.s32 %v2787, %v2817
          %v2821 = vadd.s32 %v2788, %v2817
          %v2822 = vadd.s32 %v2789, %v2817
          %v2823 = vadd.s32 %v2790, %v2817
          %v2824 = vadd.s32 %v2791, %v2817
          %v2825 = vadd.s32 %v2792, %v2817
          %v2826 = vadd.s32 %v2793, %v2817
          %v2827 = vadd.s32 %v2794, %v2817
          %v2828 = vadd.s32 %v2795, %v2817
          %v2829 = vadd.s32 %v2796, %v2817
          %v2830 = vadd.s32 %v2797, %v2817
          %v2831 = vadd.s32 %v2798, %v2817
          %v2832 = vadd.s32 %v2799, %v2817
          %v2833 = vadd.s32 %v2800, %v2817
          %v2834 = vadd.s32 %v2801, %v2817
          %v2835 = vadd.s32 %v2802, %v2817
          %v2836 = vadd.s32 %v2803, %v2817
          %v2837 = vadd.s32 %v2804, %v2817
          %v2838 = vadd.s32 %v2805, %v2817
          %v2839 = vadd.s32 %v2806, %v2817
          %v2840 = vadd.s32 %v2807, %v2817
          %v2841 = vadd.s32 %v2808, %v2817
          %v2842 = vadd.s32 %v2809, %v2817
          %v2843 = vadd.s32 %v2810, %v2817
          %v2844 = vadd.s32 %v2811, %v2817
          %v2845 = vadd.s32 %v2812, %v2817
          %v2846 = vadd.s32 %v2813, %v2817
          %v2847 = vadd.s32 %v2814, %v2817
          %v2848 = vadd.s32 %v2815, %v2817
          %v2849 = vadd.s32 %v2816, %v2817
          %v2850 = vstv %s286
          %vm2851 = vcmp.lt.s32.totalorder %v2818, %v2850
          %vm2852 = vcmp.lt.s32.totalorder %v2819, %v2850
          %vm2853 = vcmp.lt.s32.totalorder %v2820, %v2850
          %vm2854 = vcmp.lt.s32.totalorder %v2821, %v2850
          %vm2855 = vcmp.lt.s32.totalorder %v2822, %v2850
          %vm2856 = vcmp.lt.s32.totalorder %v2823, %v2850
          %vm2857 = vcmp.lt.s32.totalorder %v2824, %v2850
          %vm2858 = vcmp.lt.s32.totalorder %v2825, %v2850
          %vm2859 = vcmp.lt.s32.totalorder %v2826, %v2850
          %vm2860 = vcmp.lt.s32.totalorder %v2827, %v2850
          %vm2861 = vcmp.lt.s32.totalorder %v2828, %v2850
          %vm2862 = vcmp.lt.s32.totalorder %v2829, %v2850
          %vm2863 = vcmp.lt.s32.totalorder %v2830, %v2850
          %vm2864 = vcmp.lt.s32.totalorder %v2831, %v2850
          %vm2865 = vcmp.lt.s32.totalorder %v2832, %v2850
          %vm2866 = vcmp.lt.s32.totalorder %v2833, %v2850
          %vm2867 = vcmp.lt.s32.totalorder %v2834, %v2850
          %vm2868 = vcmp.lt.s32.totalorder %v2835, %v2850
          %vm2869 = vcmp.lt.s32.totalorder %v2836, %v2850
          %vm2870 = vcmp.lt.s32.totalorder %v2837, %v2850
          %vm2871 = vcmp.lt.s32.totalorder %v2838, %v2850
          %vm2872 = vcmp.lt.s32.totalorder %v2839, %v2850
          %vm2873 = vcmp.lt.s32.totalorder %v2840, %v2850
          %vm2874 = vcmp.lt.s32.totalorder %v2841, %v2850
          %vm2875 = vcmp.lt.s32.totalorder %v2842, %v2850
          %vm2876 = vcmp.lt.s32.totalorder %v2843, %v2850
          %vm2877 = vcmp.lt.s32.totalorder %v2844, %v2850
          %vm2878 = vcmp.lt.s32.totalorder %v2845, %v2850
          %vm2879 = vcmp.lt.s32.totalorder %v2846, %v2850
          %vm2880 = vcmp.lt.s32.totalorder %v2847, %v2850
          %vm2881 = vcmp.lt.s32.totalorder %v2848, %v2850
          %vm2882 = vcmp.lt.s32.totalorder %v2849, %v2850
          %v2883 = vsel %vm2851, %v2658, 0.0
          %v2884 = vsel %vm2852, %v2661, 0.0
          %v2885 = vsel %vm2853, %v2666, 0.0
          %v2886 = vsel %vm2854, %v2669, 0.0
          %v2887 = vsel %vm2855, %v2674, 0.0
          %v2888 = vsel %vm2856, %v2677, 0.0
          %v2889 = vsel %vm2857, %v2682, 0.0
          %v2890 = vsel %vm2858, %v2685, 0.0
          %v2891 = vsel %vm2859, %v2690, 0.0
          %v2892 = vsel %vm2860, %v2693, 0.0
          %v2893 = vsel %vm2861, %v2698, 0.0
          %v2894 = vsel %vm2862, %v2701, 0.0
          %v2895 = vsel %vm2863, %v2706, 0.0
          %v2896 = vsel %vm2864, %v2709, 0.0
          %v2897 = vsel %vm2865, %v2714, 0.0
          %v2898 = vsel %vm2866, %v2717, 0.0
          %v2899 = vsel %vm2867, %v2722, 0.0
          %v2900 = vsel %vm2868, %v2725, 0.0
          %v2901 = vsel %vm2869, %v2730, 0.0
          %v2902 = vsel %vm2870, %v2733, 0.0
          %v2903 = vsel %vm2871, %v2738, 0.0
          %v2904 = vsel %vm2872, %v2741, 0.0
          %v2905 = vsel %vm2873, %v2746, 0.0
          %v2906 = vsel %vm2874, %v2749, 0.0
          %v2907 = vsel %vm2875, %v2754, 0.0
          %v2908 = vsel %vm2876, %v2757, 0.0
          %v2909 = vsel %vm2877, %v2762, 0.0
          %v2910 = vsel %vm2878, %v2765, 0.0
          %v2911 = vsel %vm2879, %v2770, 0.0
          %v2912 = vsel %vm2880, %v2773, 0.0
          %v2913 = vsel %vm2881, %v2778, 0.0
          %v2914 = vsel %vm2882, %v2781, 0.0
          %v2915 = vpack.c.bf16 %v2884, %v2883
          %v2916 = vpack.c.bf16 %v2886, %v2885
          %v2917 = vpack.c.bf16 %v2888, %v2887
          %v2918 = vpack.c.bf16 %v2890, %v2889
          %v2919 = vpack.c.bf16 %v2892, %v2891
          %v2920 = vpack.c.bf16 %v2894, %v2893
          %v2921 = vpack.c.bf16 %v2896, %v2895
          %v2922 = vpack.c.bf16 %v2898, %v2897
          %v2923 = vpack.c.bf16 %v2900, %v2899
          %v2924 = vpack.c.bf16 %v2902, %v2901
          %v2925 = vpack.c.bf16 %v2904, %v2903
          %v2926 = vpack.c.bf16 %v2906, %v2905
          %v2927 = vpack.c.bf16 %v2908, %v2907
          %v2928 = vpack.c.bf16 %v2910, %v2909
          %v2929 = vpack.c.bf16 %v2912, %v2911
          %v2930 = vpack.c.bf16 %v2914, %v2913
          %v2947 = vunpack.c.l.b16 %v2915
          %v2948 = vunpack.c.h.b16 %v2915
          %v2949 = vunpack.c.l.b16 %v2916
          %v2950 = vunpack.c.h.b16 %v2916
          %v2951 = vunpack.c.l.b16 %v2917
          %v2952 = vunpack.c.h.b16 %v2917
          %v2953 = vunpack.c.l.b16 %v2918
          %v2954 = vunpack.c.h.b16 %v2918
          %v2955 = vunpack.c.l.b16 %v2919
          %v2956 = vunpack.c.h.b16 %v2919
          %v2957 = vunpack.c.l.b16 %v2920
          %v2958 = vunpack.c.h.b16 %v2920
          %v2959 = vunpack.c.l.b16 %v2921
          %v2960 = vunpack.c.h.b16 %v2921
          %v2961 = vunpack.c.l.b16 %v2922
          %v2962 = vunpack.c.h.b16 %v2922
          %v2963 = vunpack.c.l.b16 %v2923
          %v2964 = vunpack.c.h.b16 %v2923
          %v2965 = vunpack.c.l.b16 %v2924
          %v2966 = vunpack.c.h.b16 %v2924
          %v2967 = vunpack.c.l.b16 %v2925
          %v2968 = vunpack.c.h.b16 %v2925
          %v2969 = vunpack.c.l.b16 %v2926
          %v2970 = vunpack.c.h.b16 %v2926
          %v2971 = vunpack.c.l.b16 %v2927
          %v2972 = vunpack.c.h.b16 %v2927
          %v2973 = vunpack.c.l.b16 %v2928
          %v2974 = vunpack.c.h.b16 %v2928
          %v2975 = vunpack.c.l.b16 %v2929
          %v2976 = vunpack.c.h.b16 %v2929
          %v2977 = vunpack.c.l.b16 %v2930
          %v2978 = vunpack.c.h.b16 %v2930
          %v2979 = vpack.c.b16 %v2947, %v2947
          %v2980 = vpack.c.b16 %v2948, %v2948
          %v2981 = vpack.c.b16 %v2949, %v2949
          %v2982 = vpack.c.b16 %v2950, %v2950
          %v2983 = vpack.c.b16 %v2951, %v2951
          %v2984 = vpack.c.b16 %v2952, %v2952
          %v2985 = vpack.c.b16 %v2953, %v2953
          %v2986 = vpack.c.b16 %v2954, %v2954
          %v2987 = vpack.c.b16 %v2955, %v2955
          %v2988 = vpack.c.b16 %v2956, %v2956
          %v2989 = vpack.c.b16 %v2957, %v2957
          %v2990 = vpack.c.b16 %v2958, %v2958
          %v2991 = vpack.c.b16 %v2959, %v2959
          %v2992 = vpack.c.b16 %v2960, %v2960
          %v2993 = vpack.c.b16 %v2961, %v2961
          %v2994 = vpack.c.b16 %v2962, %v2962
          %v2995 = vpack.c.b16 %v2963, %v2963
          %v2996 = vpack.c.b16 %v2964, %v2964
          %v2997 = vpack.c.b16 %v2965, %v2965
          %v2998 = vpack.c.b16 %v2966, %v2966
          %v2999 = vpack.c.b16 %v2967, %v2967
          %v3000 = vpack.c.b16 %v2968, %v2968
          %v3001 = vpack.c.b16 %v2969, %v2969
          %v3002 = vpack.c.b16 %v2970, %v2970
          %v3003 = vpack.c.b16 %v2971, %v2971
          %v3004 = vpack.c.b16 %v2972, %v2972
          %v3005 = vpack.c.b16 %v2973, %v2973
          %v3006 = vpack.c.b16 %v2974, %v2974
          %v3007 = vpack.c.b16 %v2975, %v2975
          %v3008 = vpack.c.b16 %v2976, %v2976
          %v3009 = vpack.c.b16 %v2977, %v2977
          %v3010 = vpack.c.b16 %v2978, %v2978
          %3043 = vst [vmem:[%s277] sm:$0xf] %v2979
          %3044 = vst [vmem:[%s277 + $0x4] sm:$0xf] %v2980
          %3045 = vst [vmem:[%s277 + $0x8] sm:$0xf] %v2981
          %3046 = vst [vmem:[%s277 + $0xc] sm:$0xf] %v2982
          %3047 = vst [vmem:[%s277 + $0x10] sm:$0xf] %v2983
          %3048 = vst [vmem:[%s277 + $0x14] sm:$0xf] %v2984
          %3049 = vst [vmem:[%s277 + $0x18] sm:$0xf] %v2985
          %3050 = vst [vmem:[%s277 + $0x1c] sm:$0xf] %v2986
          %3051 = vst [vmem:[%s277 + $0x20] sm:$0xf] %v2987
          %3052 = vst [vmem:[%s277 + $0x24] sm:$0xf] %v2988
          %3053 = vst [vmem:[%s277 + $0x28] sm:$0xf] %v2989
          %3054 = vst [vmem:[%s277 + $0x2c] sm:$0xf] %v2990
          %3055 = vst [vmem:[%s277 + $0x30] sm:$0xf] %v2991
          %3056 = vst [vmem:[%s277 + $0x34] sm:$0xf] %v2992
          %3057 = vst [vmem:[%s277 + $0x38] sm:$0xf] %v2993
          %3058 = vst [vmem:[%s277 + $0x3c] sm:$0xf] %v2994
          %3059 = vst [vmem:[%s277 + $0x40] sm:$0xf] %v2995
          %3060 = vst [vmem:[%s277 + $0x44] sm:$0xf] %v2996
          %3061 = vst [vmem:[%s277 + $0x48] sm:$0xf] %v2997
          %3062 = vst [vmem:[%s277 + $0x4c] sm:$0xf] %v2998
          %3063 = vst [vmem:[%s277 + $0x50] sm:$0xf] %v2999
          %3064 = vst [vmem:[%s277 + $0x54] sm:$0xf] %v3000
          %3065 = vst [vmem:[%s277 + $0x58] sm:$0xf] %v3001
          %3066 = vst [vmem:[%s277 + $0x5c] sm:$0xf] %v3002
          %3067 = vst [vmem:[%s277 + $0x60] sm:$0xf] %v3003
          %3068 = vst [vmem:[%s277 + $0x64] sm:$0xf] %v3004
          %3069 = vst [vmem:[%s277 + $0x68] sm:$0xf] %v3005
          %3070 = vst [vmem:[%s277 + $0x6c] sm:$0xf] %v3006
          %3071 = vst [vmem:[%s277 + $0x70] sm:$0xf] %v3007
          %3072 = vst [vmem:[%s277 + $0x74] sm:$0xf] %v3008
          %3073 = vst [vmem:[%s277 + $0x78] sm:$0xf] %v3009
          %3074 = vst [vmem:[%s277 + $0x7c] sm:$0xf] %v3010
        $region56: #{tpu_custom_call.1} parent=43 // pred_fallthru
          _
        %p3075 = scmp.ge.s32.totalorder %s287, %s286
        // Predicated region
        $region57: #{tpu_custom_call.1} parent=43 // pred_check
          %p3076 = pneg %p3075
        $region58: #{tpu_custom_call.1} parent=43 // pred_check_branch
          %3078 = sbr.rel (%p3076) target = $region60
        $region59: #{tpu_custom_call.1} parent=43 // pred_region
          %3079 = vst [vmem:[%s277] sm:$0xf] 0
          %3080 = vst [vmem:[%s277 + $0x4] sm:$0xf] 0
          %3081 = vst [vmem:[%s277 + $0x8] sm:$0xf] 0
          %3082 = vst [vmem:[%s277 + $0xc] sm:$0xf] 0
          %3083 = vst [vmem:[%s277 + $0x10] sm:$0xf] 0
          %3084 = vst [vmem:[%s277 + $0x14] sm:$0xf] 0
          %3085 = vst [vmem:[%s277 + $0x18] sm:$0xf] 0
          %3086 = vst [vmem:[%s277 + $0x1c] sm:$0xf] 0
          %3087 = vst [vmem:[%s277 + $0x20] sm:$0xf] 0
          %3088 = vst [vmem:[%s277 + $0x24] sm:$0xf] 0
          %3089 = vst [vmem:[%s277 + $0x28] sm:$0xf] 0
          %3090 = vst [vmem:[%s277 + $0x2c] sm:$0xf] 0
          %3091 = vst [vmem:[%s277 + $0x30] sm:$0xf] 0
          %3092 = vst [vmem:[%s277 + $0x34] sm:$0xf] 0
          %3093 = vst [vmem:[%s277 + $0x38] sm:$0xf] 0
          %3094 = vst [vmem:[%s277 + $0x3c] sm:$0xf] 0
          %3095 = vst [vmem:[%s277 + $0x40] sm:$0xf] 0
          %3096 = vst [vmem:[%s277 + $0x44] sm:$0xf] 0
          %3097 = vst [vmem:[%s277 + $0x48] sm:$0xf] 0
          %3098 = vst [vmem:[%s277 + $0x4c] sm:$0xf] 0
          %3099 = vst [vmem:[%s277 + $0x50] sm:$0xf] 0
          %3100 = vst [vmem:[%s277 + $0x54] sm:$0xf] 0
          %3101 = vst [vmem:[%s277 + $0x58] sm:$0xf] 0
          %3102 = vst [vmem:[%s277 + $0x5c] sm:$0xf] 0
          %3103 = vst [vmem:[%s277 + $0x60] sm:$0xf] 0
          %3104 = vst [vmem:[%s277 + $0x64] sm:$0xf] 0
          %3105 = vst [vmem:[%s277 + $0x68] sm:$0xf] 0
          %3106 = vst [vmem:[%s277 + $0x6c] sm:$0xf] 0
          %3107 = vst [vmem:[%s277 + $0x70] sm:$0xf] 0
          %3108 = vst [vmem:[%s277 + $0x74] sm:$0xf] 0
          %3109 = vst [vmem:[%s277 + $0x78] sm:$0xf] 0
          %3110 = vst [vmem:[%s277 + $0x7c] sm:$0xf] 0
        $region60: #{tpu_custom_call.1} parent=43 // pred_fallthru
          _
        %s3111 = sand.u32 %s163, 1
        %s3112 = scalar_lea.sflag [#allocation6], %s3111
        %s3113 = sand.u32 %s163, 1
        %s3114 = smul.addr %s3113, 128
        %s3115 = scalar_lea.vmem [#allocation9], %s3114
        // Predicated region
        $region61: #{tpu_custom_call.1} parent=43 // pred_check
          %p3116 = pneg %p173
        $region62: #{tpu_custom_call.1} parent=43 // pred_check_branch
          %3118 = sbr.rel (%p3116) target = $region64
        $region63: #{tpu_custom_call.1} parent=43 // pred_region
          %s3119 = smul.u32 32, %s24
          %s3121 = ssub.s32 2048, 2048
          %3122 = vsyncadd %s3112, %s3121
          %s3123 = smul.addr %s3119, 64
          %s3124 = scalar_lea.hbm %s7, %s3123
          %s3125 = sshll.u32 %s3115, 4
          %s3126 = int_to_ptr.vmem [resolvable:$true] %s3125
          %3131 = dma.vmem_to_hbm [thread:$0]  %s3126, 2048, %s3124, %s3112, 64, 64, 4
        $region64: #{tpu_custom_call.1} parent=43 // pred_fallthru
          _
      $region44: #{tpu_custom_call.1} parent=5 // pred_fallthru
        _
      %p3132 = scmp.le.s32.totalorder 2, %s19
      // Predicated region
      $region65: #{tpu_custom_call.1} parent=5 // pred_check
        %p3133 = pneg %p3132
      $region66: #{tpu_custom_call.1} parent=5 // pred_check_branch
        %3135 = sbr.rel (%p3133) target = $region68
      $region67: #{tpu_custom_call.1} parent=5 // pred_region
        %s3136 = ssub.s32 %s19, 2
        // Predicated region
        $region69: #{tpu_custom_call.1} parent=67 // pred_check
          %p3137 = pneg %p179
        $region70: #{tpu_custom_call.1} parent=67 // pred_check_branch
          %3139 = sbr.rel (%p3137) target = $region72
        $region71: #{tpu_custom_call.1} parent=67 // pred_region
          %s3140 = sand.u32 %s164, 1
          %s3141 = scalar_lea.sflag [#allocation6], %s3140
          %s3142 = sand.u32 %s164, 1
          %s3143 = smul.addr %s3142, 128
          %s3144 = scalar_lea.vmem [#allocation9], %s3143
          %3145 = dma.done %s3141, 2048
        $region72: #{tpu_custom_call.1} parent=67 // pred_fallthru
          _
      $region68: #{tpu_custom_call.1} parent=5 // pred_fallthru
        _
    $region6: #{tpu_custom_call.1} parent=1 // loop_footer
      %s23 = sadd.s32 1, %s19
    $region7: #{tpu_custom_call.1} parent=1 // loop_footer_branch
      %18 = sbr.rel target = $region3
    $region8: #{tpu_custom_call.1} parent=1 // loop_exit
      _
    %3146 = vsyncpa [#allocation5], 1
    %s3147 = scalar_lea.sflag [#allocation5], 1
    %3148 = vsyncpa %s3147, 1
    %3149 = vsyncpa [#allocation8], 1
    %3150 = vsyncpa [#allocation6], 1
    %s3151 = scalar_lea.sflag [#allocation6], 1
    %3152 = vsyncpa %s3151, 1

</llo_original>
